<compile_context>
chip_gen: v6e
topology: v6e:2x2x1
jax: 0.10.0
libtpu: 0.0.40
codegen_flags: <defaults>
</compile_context>

<pallas_src>
from functools import partial
from math import sqrt

import jax
import jax.numpy as jnp
from jax.experimental import pallas as pl
from jax.experimental.pallas import tpu as pltpu


def _round_up(x, m):
    return -(-x // m) * m


def _tpu_vmem_and_cores():
    """Best-effort query of per-core VMEM capacity and TensorCore count."""
    vmem = 64 * 1024 * 1024            # conservative default (v7x-sized VMEM)
    cores = 1
    try:
        info = pltpu.get_tpu_info()
        v = getattr(info, "vmem_capacity_bytes", None)
        if isinstance(v, int) and v > 0:
            vmem = v
        for name in ("num_cores", "core_count", "num_tensorcores",
                     "tensorcore_count"):
            c = getattr(info, name, None)
            if isinstance(c, int) and c > 0:
                cores = c
                break
    except Exception:
        pass
    if cores == 1:
        try:
            dev = jax.devices()[0]
            for name in ("num_cores", "core_count"):
                c = getattr(dev, name, None)
                if isinstance(c, int) and c > 0:
                    cores = c
                    break
        except Exception:
            pass
    return vmem, cores


# --------------------------------------------------------------------------
# Kernel
# --------------------------------------------------------------------------
def _siren_kernel(*refs, layers):
    """Fused SIREN forward for one row tile.

    refs = (x_ref, [w_ref, b_ref?] per layer ..., o_ref).
    `layers` is a static tuple of (has_bias, is_last, act_scale) per layer;
    act_scale is None when w0 was folded into the weights (or for is_last).
    """
    x_ref, o_ref = refs[0], refs[-1]
    prefs = refs[1:-1]

    h = x_ref[...]
    idx = 0
    for has_bias, is_last, act_scale in layers:
        w_ref = prefs[idx]
        idx += 1
        b_ref = None
        if has_bias:
            b_ref = prefs[idx]
            idx += 1
        # Cast to the (possibly bf16) matmul dtype in VMEM — never in the
        # wrapper (that would add an extra, un-hidden HBM pass over x).
        acc = jnp.dot(h.astype(w_ref.dtype), w_ref[...],
                      preferred_element_type=jnp.float32)
        if has_bias:
            acc = acc + b_ref[...].astype(jnp.float32)   # broadcast over rows
        if is_last:
            h = jax.nn.sigmoid(acc)                      # exp on the EUP slot
        else:
            if act_scale is not None:                    # only if w0 not folded
                acc = acc * jnp.float32(act_scale)
            h = jnp.sin(acc)                             # VPU polynomial
    o_ref[...] = h.astype(o_ref.dtype)


# --------------------------------------------------------------------------
# Parameter preparation (one-time; hoisted out of the per-call path)
# --------------------------------------------------------------------------
def prepare_siren_params(weight, bias=None, *, w0=30.0, is_last=False,
                         fold_w0=True, compute_dtype=None):
    """Pre-transpose, optionally fold w0 into W/b, optionally cast W to bf16.

    weight: (dim_out, dim_in) in PyTorch layout; bias: (dim_out,) or None.
    Folding w0 is an exact algebraic rewrite of sin(w0*(xW^T+b)).
    Bias stays f32 (added after the f32 accumulation inside the kernel).
    """
    weight = jnp.asarray(weight, jnp.float32)
    dim_out, dim_in = weight.shape
    w_t = weight.T                                         # (dim_in, dim_out)
    b = None if bias is None else jnp.asarray(bias, jnp.float32)

    act_scale = None
    if not is_last:
        if fold_w0:
            w_t = w_t * jnp.float32(w0)
            if b is not None:
                b = b * jnp.float32(w0)
        else:
            act_scale = float(w0)
    if compute_dtype is not None:
        w_t = w_t.astype(compute_dtype)
    bias2d = None if b is None else b.reshape(1, dim_out)
    return {"w_t": w_t, "bias": bias2d, "is_last": bool(is_last),
            "act_scale": act_scale, "dim_in": dim_in, "dim_out": dim_out}


# --------------------------------------------------------------------------
# Tile selection
# --------------------------------------------------------------------------
def _pick_tm(N, per_row_bytes, avail_bytes, num_cores, tm_override):
    if tm_override is None:
        tm = avail_bytes // max(per_row_bytes, 1)
        tm = max(8, min(tm, 4096))
        if num_cores > 1:
            # Only shrink on multi-TC chips (v7x): aim for >= 2 tiles per core.
            while tm > 256 and -(-N // tm) < 2 * num_cores:
                tm //= 2
    else:
        tm = int(tm_override)
    tm = max(8, (tm // 8) * 8)
    if tm >= N:
        tm = N        # single full block; block dim == full array dim is legal
    return tm


def _pick_tn(dim_in, dim_out, w_itemsize, budget):
    # Largest multiple of 128 whose double-buffered weight slice uses <= 1/4
    # of the budget (fallback path only).
    denom = max(2 * dim_in * w_itemsize, 1)
    tn = (budget // 4) // denom
    tn = max(128, (tn // 128) * 128)
    if tn >= dim_out:
        tn = dim_out
    return tn


# --------------------------------------------------------------------------
# pallas_call wrappers
# --------------------------------------------------------------------------
def _call_fused(x, layer_params, *, out_dtype, tm, vmem_limit):
    """All layers in one pallas_call; weights resident in VMEM; row tiling."""
    N, dim_in = x.shape
    dim_out = layer_params[-1]["dim_out"]
    grid = (pl.cdiv(N, tm),)                  # ragged last block handled by Pallas

    in_specs = [pl.BlockSpec((tm, dim_in), lambda i: (i, 0))]
    args = [x]
    meta = []
    flops = 0
    trans = 0
    w_bytes = 0
    prev = dim_in
    for p in layer_params:
        w = p["w_t"]
        # Grid-invariant block index -> DMA'd once, resident across the grid.
        in_specs.append(pl.BlockSpec(w.shape, lambda i: (0, 0)))
        args.append(w)
        has_bias = p["bias"] is not None
        if has_bias:
            b = p["bias"]
            in_specs.append(pl.BlockSpec(b.shape, lambda i: (0, 0)))
            args.append(b)
        meta.append((has_bias, bool(p["is_last"]), p["act_scale"]))
        flops += 2 * N * prev * p["dim_out"]
        trans += N * p["dim_out"]
        w_bytes += w.size * w.dtype.itemsize
        prev = p["dim_out"]

    cost = pl.CostEstimate(
        flops=int(flops), transcendentals=int(trans),
        bytes_accessed=int(N * dim_in * x.dtype.itemsize + w_bytes
                           + N * dim_out * jnp.dtype(out_dtype).itemsize))

    return pl.pallas_call(
        partial(_siren_kernel, layers=tuple(meta)),
        out_shape=jax.ShapeDtypeStruct((N, dim_out), out_dtype),
        grid_spec=pltpu.PrefetchScalarGridSpec(
            num_scalar_prefetch=0,
            grid=grid,
            in_specs=in_specs,
            out_specs=pl.BlockSpec((tm, dim_out), lambda i: (i, 0)),
        ),
        compiler_params=pltpu.CompilerParams(
            dimension_semantics=("parallel",),
            vmem_limit_bytes=int(vmem_limit),
        ),
        cost_estimate=cost,
    )(*args)


def _call_tiled(x, p, *, out_dtype, tm, tn, vmem_limit):
    """Single layer with a dim_out grid axis (weight too big to stay resident)."""
    N, dim_in = x.shape
    dim_out = p["dim_out"]
    w, b = p["w_t"], p["bias"]
    has_bias = b is not None
    grid = (pl.cdiv(N, tm), pl.cdiv(dim_out, tn))

    in_specs = [pl.BlockSpec((tm, dim_in), lambda i, j: (i, 0)),
                pl.BlockSpec((dim_in, tn), lambda i, j: (0, j))]
    args = [x, w]
    if has_bias:
        in_specs.append(pl.BlockSpec((1, tn), lambda i, j: (0, j)))
        args.append(b)
    meta = ((has_bias, bool(p["is_last"]), p["act_scale"]),)

    return pl.pallas_call(
        partial(_siren_kernel, layers=meta),
        out_shape=jax.ShapeDtypeStruct((N, dim_out), out_dtype),
        grid_spec=pltpu.PrefetchScalarGridSpec(
            num_scalar_prefetch=0,
            grid=grid,
            in_specs=in_specs,
            out_specs=pl.BlockSpec((tm, tn), lambda i, j: (i, j)),
        ),
        compiler_params=pltpu.CompilerParams(
            dimension_semantics=("parallel", "parallel"),
            vmem_limit_bytes=int(vmem_limit),
        ),
    )(*args)


# --------------------------------------------------------------------------
# Public forwards
# --------------------------------------------------------------------------
def siren_mlp_forward(x, layer_params, *, out_dtype=None, tm=None, tn=None):
    """Fused SIREN MLP forward.  x: (N, dim_in); layer_params: list of dicts
    from prepare_siren_params.  Runs all layers in a single pallas_call when
    the weights fit in VMEM (the common case); otherwise falls back to
    per-layer calls, dim_out-tiled if a single weight is too large."""
    if not isinstance(layer_params, (list, tuple)) or len(layer_params) == 0:
        raise ValueError("layer_params must be a non-empty list")
    N, dim_in = x.shape
    assert dim_in == layer_params[0]["dim_in"], "x / first-layer dim_in mismatch"
    for a, b in zip(layer_params[:-1], layer_params[1:]):
        assert a["dim_out"] == b["dim_in"], "layer dim chain mismatch"
    out_dtype = jnp.dtype(out_dtype) if out_dtype is not None else jnp.dtype(x.dtype)

    vmem_cap, num_cores = _tpu_vmem_and_cores()
    budget = int(vmem_cap * 0.55)
    vmem_limit = min(int(vmem_cap * 0.85), 100 * 1024 * 1024)

    # Resident parameter footprint (Pallas double-buffers even grid-invariant
    # blocks; biases get sublane/lane padded in VMEM).
    resident = 0
    max_width = dim_in
    for p in layer_params:
        w = p["w_t"]
        resident += 2 * w.size * w.dtype.itemsize
        if p["bias"] is not None:
            resident += 2 * 8 * _round_up(p["dim_out"], 128) * 4
        max_width = max(max_width, p["dim_out"])

    if tn is None and resident <= budget // 2:
        per_row = (2 * dim_in * x.dtype.itemsize
                   + 2 * layer_params[-1]["dim_out"] * out_dtype.itemsize
                   + 4 * max_width * 4)              # a few live f32 intermediates
        tm_sel = _pick_tm(N, per_row, budget - resident, num_cores, tm)
        return _call_fused(x, layer_params, out_dtype=out_dtype, tm=tm_sel,
                           vmem_limit=vmem_limit)

    # Fallback: per-layer calls (activations via HBM); dim_out-tiled when the
    # weight is too big to stay resident, or when tn is forced.
    h = x
    last = len(layer_params) - 1
    for li, p in enumerate(layer_params):
        lo_dtype = out_dtype if li == last else jnp.dtype(h.dtype)
        w = p["w_t"]
        single_resident = 2 * w.size * w.dtype.itemsize
        if tn is None and single_resident <= budget // 2:
            per_row = (2 * p["dim_in"] * h.dtype.itemsize
                       + 2 * p["dim_out"] * lo_dtype.itemsize
                       + 4 * max(p["dim_in"], p["dim_out"]) * 4)
            tm_sel = _pick_tm(N, per_row, budget - single_resident,
                              num_cores, tm)
            h = _call_fused(h, [p], out_dtype=lo_dtype, tm=tm_sel,
                            vmem_limit=vmem_limit)
        else:
            if tn is not None:
                tn_sel = int(tn)
            else:
                tn_sel = _pick_tn(p["dim_in"], p["dim_out"],
                                  w.dtype.itemsize, budget)
            if tn_sel >= p["dim_out"]:
                tn_sel = p["dim_out"]
            else:
                tn_sel = max(128, (tn_sel // 128) * 128)
                if tn_sel >= p["dim_out"]:
                    tn_sel = p["dim_out"]
            fixed = (2 * p["dim_in"] * tn_sel * w.dtype.itemsize
                     + 2 * 8 * _round_up(tn_sel, 128) * 4)
            per_row = (2 * p["dim_in"] * h.dtype.itemsize
                       + 2 * tn_sel * lo_dtype.itemsize + 4 * tn_sel * 4)
            tm_sel = _pick_tm(N, per_row, max(budget - fixed, per_row * 8),
                              num_cores, tm)
            h = _call_tiled(h, p, out_dtype=lo_dtype, tm=tm_sel, tn=tn_sel,
                            vmem_limit=vmem_limit)
    return h


def siren_layer_forward(x, params, *, out_dtype=None, tm=None, tn=None):
    """Single SirenLayer forward (matches the PyTorch module's forward)."""
    return siren_mlp_forward(x, [params], out_dtype=out_dtype, tm=tm, tn=tn)


# --------------------------------------------------------------------------
# Reference / init helpers (test harness)
# --------------------------------------------------------------------------
def siren_reference(x, layer_params):
    """Plain-JAX forward over the *prepared* parameters.  With fold_w0=True
    this is algebraically identical to the module's sin(w0*(xW^T+b)) /
    sigmoid(xW^T+b); using the same folded arrays isolates kernel error from
    (tiny) w0-folding rounding differences."""
    h = jnp.asarray(x, jnp.float32)
    for p in layer_params:
        pre = h @ p["w_t"].astype(jnp.float32)
        if p["bias"] is not None:
            pre = pre + p["bias"][0]
        if p["is_last"]:
            h = jax.nn.sigmoid(pre)
        else:
            if p["act_scale"] is not None:
                pre = p["act_scale"] * pre
            h = jnp.sin(pre)
    return h


def init_siren_params(key, dim_in, dim_out, *, w0=30.0, c=6.0,
                      is_first=False, is_last=False, use_bias=True):
    """Deterministic parameter init matching SirenLayer.__init__ semantics."""
    kw, kb = jax.random.split(key)
    if is_last:
        # PyTorch default nn.Linear init: U(-1/sqrt(dim_in), 1/sqrt(dim_in)).
        w_std = 1.0 / sqrt(dim_in)
    else:
        w_std = (1.0 / dim_in) if is_first else (sqrt(c / dim_in) / w0)
    weight = jax.random.uniform(kw, (dim_out, dim_in), jnp.float32,
                                minval=-w_std, maxval=w_std)
    bias = None
    if use_bias:
        bias = jax.random.uniform(kb, (dim_out,), jnp.float32,
                                  minval=-w_std, maxval=w_std)
    return weight, bias


if __name__ == "__main__":
    key = jax.random.PRNGKey(0)
    k_x, k1, k2, k3, k4 = jax.random.split(key, 5)

    N, dim_in, dim_hidden, dim_rgb, dim_wide = 200, 32, 64, 3, 256
    w0 = 30.0

    # Coordinates in [0, 1] (COIN++ convention); N=200 exercises ragged tiles.
    x = jax.random.uniform(k_x, (N, dim_in), jnp.float32)

    w1, b1 = init_siren_params(k1, dim_in, dim_hidden, w0=w0, is_first=True)
    w2, b2 = init_siren_params(k2, dim_hidden, dim_hidden, w0=w0)
    w3, b3 = init_siren_params(k3, dim_hidden, dim_rgb, w0=w0, is_last=True)
    w4, b4 = init_siren_params(k4, dim_in, dim_wide, w0=w0, is_first=True)

    # Module-semantics references (plain JAX, unfolded).
    ref_h1 = jnp.sin(w0 * (x @ w1.T + b1))
    ref_h2 = jnp.sin(w0 * (ref_h1 @ w2.T + b2))
    ref_y = jax.nn.sigmoid(ref_h2 @ w3.T + b3)

    # Prepared params (w0 folded into W/b for non-last layers).
    p1 = prepare_siren_params(w1, b1, w0=w0)
    p2 = prepare_siren_params(w2, b2, w0=w0)
    p3 = prepare_siren_params(w3, b3, w0=w0, is_last=True)
    p4 = prepare_siren_params(w4, b4, w0=w0)

    # 1) Hidden layer with the w0 multiply kept in-kernel (fold_w0=False):
    #    direct check against the module-semantics reference.
    p1_nf = prepare_siren_params(w1, b1, w0=w0, fold_w0=False)
    h_nf = jax.block_until_ready(siren_layer_forward(x, p1_nf))
    assert h_nf.shape == (N, dim_hidden)
    assert jnp.allclose(h_nf, ref_h1, atol=1e-4, rtol=1e-4)

    # 2) Hidden layer, folded weights, forced tm=128 so the cdiv grid with a
    #    ragged last row block (no wrapper padding / slicing) is exercised.
    h1 = jax.block_until_ready(siren_layer_forward(x, p1, tm=128))
    assert h1.shape == (N, dim_hidden)
    assert jnp.allclose(h1, siren_reference(x, [p1]), atol=1e-4, rtol=1e-4)

    # 3) Last layer (sigmoid head, dim_out=3, masked narrow stores; no fold
    #    applies here): direct module-semantics check.
    y3 = jax.block_until_ready(siren_layer_forward(ref_h2, p3))
    assert y3.shape == (N, dim_rgb)
    assert jnp.allclose(y3, ref_y, atol=1e-5, rtol=1e-5)

    # 4) Fused 3-layer SIREN MLP in a single pallas_call (weights resident in
    #    VMEM; intermediate activations never touch HBM).
    y = jax.block_until_ready(siren_mlp_forward(x, [p1, p2, p3]))
    assert y.shape == (N, dim_rgb)
    assert jnp.allclose(y, siren_reference(x, [p1, p2, p3]), atol=1e-3, rtol=1e-3)

    # 5) Forced dim_out-tiled fallback path (robustness path for weights too
    #    large to stay resident): 32->256 layer, tn=128, ragged row tiles.
    h_t = jax.block_until_ready(siren_layer_forward(x, p4, tm=128, tn=128))
    assert h_t.shape == (N, dim_wide)
    assert jnp.allclose(h_t, siren_reference(x, [p4]), atol=1e-4, rtol=1e-4)

    # 6) use_bias=False path.
    p_nb = prepare_siren_params(w1, None, w0=w0)
    h_nb = jax.block_until_ready(siren_layer_forward(x, p_nb))
    assert h_nb.shape == (N, dim_hidden)
    assert jnp.allclose(h_nb, siren_reference(x, [p_nb]), atol=1e-4, rtol=1e-4)

    # 7) bf16 weights + bf16 activation streaming (MXU-native on all gens);
    #    accumulation, bias add and sin/sigmoid stay in f32 inside the kernel.
    p1b = prepare_siren_params(w1, b1, w0=w0, compute_dtype=jnp.bfloat16)
    p2b = prepare_siren_params(w2, b2, w0=w0, compute_dtype=jnp.bfloat16)
    p3b = prepare_siren_params(w3, b3, w0=w0, is_last=True,
                               compute_dtype=jnp.bfloat16)
    yb = jax.block_until_ready(
        siren_mlp_forward(x, [p1b, p2b, p3b], out_dtype=jnp.bfloat16))
    assert yb.shape == (N, dim_rgb) and yb.dtype == jnp.bfloat16
    assert bool(jnp.all(jnp.isfinite(yb.astype(jnp.float32))))
    assert jnp.allclose(yb.astype(jnp.float32), y.astype(jnp.float32),
                        atol=0.2)   # loose: sin(w0*.) amplifies bf16 rounding

    print("KERNEL_OK")
</pallas_src>

<mosaic_0001>
module attributes {stable_mosaic.version = 11 : i64} {
  func.func @_siren_kernel(%arg0: i32, %arg1: memref<200x32xf32, #tpu.memory_space<vmem>>, %arg2: memref<32x64xf32, #tpu.memory_space<vmem>>, %arg3: memref<1x64xf32, #tpu.memory_space<vmem>>, %arg4: memref<200x64xf32, #tpu.memory_space<vmem>>) attributes {dimension_semantics = [#tpu.dimension_semantics<parallel>], iteration_bounds = array<i64: 1>, scalar_prefetch = 0 : i64, scratch_operands = 0 : i64, tpu.core_type = #tpu.core_type<tc>, window_params = [{transform_indices = @transform_0, window_bounds = array<i64: 200, 32>}, {pipeline_mode = #tpu.pipeline_mode<synchronous>, transform_indices = @transform_1, window_bounds = array<i64: 32, 64>}, {pipeline_mode = #tpu.pipeline_mode<synchronous>, transform_indices = @transform_2, window_bounds = array<i64: 1, 64>}, {transform_indices = @transform_3, window_bounds = array<i64: 200, 64>}]} {
    %c0 = arith.constant 0 : index
    %c0_0 = arith.constant 0 : index
    %0 = vector.load %arg1[%c0, %c0_0] : memref<200x32xf32, #tpu.memory_space<vmem>>, vector<200x32xf32>
    %c0_1 = arith.constant 0 : index
    %c0_2 = arith.constant 0 : index
    %1 = vector.load %arg2[%c0_1, %c0_2] : memref<32x64xf32, #tpu.memory_space<vmem>>, vector<32x64xf32>
    %cst = arith.constant dense<0.000000e+00> : vector<200x64xf32>
    %2 = tpu.matmul %0, %1, %cst {dimension_numbers = #tpu.dot_dimension_numbers<[1], [0], [0], [1], [0, 0, 1, 1], [], []>} : vector<200x32xf32>, vector<32x64xf32>, vector<200x64xf32> -> vector<200x64xf32>
    %c0_3 = arith.constant 0 : index
    %c0_4 = arith.constant 0 : index
    %3 = vector.load %arg3[%c0_3, %c0_4] : memref<1x64xf32, #tpu.memory_space<vmem>>, vector<1x64xf32>
    %4 = vector.broadcast %3 : vector<1x64xf32> to vector<200x64xf32>
    %5 = arith.addf %2, %4 : vector<200x64xf32>
    %cst_5 = arith.constant 3.000000e+01 : f32
    %6 = vector.broadcast %cst_5 : f32 to vector<200x64xf32>
    %7 = arith.mulf %5, %6 : vector<200x64xf32>
    %8 = math.sin %7 : vector<200x64xf32>
    %c0_6 = arith.constant 0 : index
    %c0_7 = arith.constant 0 : index
    %9 = vector.load %arg4[%c0_6, %c0_7] : memref<200x64xf32, #tpu.memory_space<vmem>>, vector<200x64xf32>
    tpu.vector_store %arg4[%c0_6, %c0_7], %8 {strides = array<i32>} : memref<200x64xf32, #tpu.memory_space<vmem>>, vector<200x64xf32>,
    return
  }
  func.func @transform_0(%arg0: i32) -> (i32, i32) {
    %c0_i32 = arith.constant 0 : i32
    %c0_i32_0 = arith.constant 0 : i32
    return %arg0, %c0_i32 : i32, i32
  }
  func.func @transform_1(%arg0: i32) -> (i32, i32) {
    %c0_i32 = arith.constant 0 : i32
    %c0_i32_0 = arith.constant 0 : i32
    %c0_i32_1 = arith.constant 0 : i32
    return %c0_i32, %c0_i32_0 : i32, i32
  }
  func.func @transform_2(%arg0: i32) -> (i32, i32) {
    %c0_i32 = arith.constant 0 : i32
    %c0_i32_0 = arith.constant 0 : i32
    %c0_i32_1 = arith.constant 0 : i32
    return %c0_i32, %c0_i32_0 : i32, i32
  }
  func.func @transform_3(%arg0: i32) -> (i32, i32) {
    %c0_i32 = arith.constant 0 : i32
    %c0_i32_0 = arith.constant 0 : i32
    return %arg0, %c0_i32 : i32, i32
  }
}

</mosaic_0001>

<llo_original>
// kernel: tpu_custom_call.1
$region0: #{tpu_custom_call.1}
  #allocation0 [shape = 'u32[]', space=smem, size = 0x4, offset = 0x4, fixed_abs, tag = 'smem constant byte address 0x4 - core index']
  #allocation1 [shape = 'u32[144,128]{1,0:T(1,128)}', space=vmem, size = 0x12000, scoped, tag = 'internal scratch']
  %s0 = inlined_call_operand.vmem [shape: f32[200,32], index: 0, kind: input, shape index: {}]
  %s1 = inlined_call_operand.vmem [shape: f32[32,64], index: 1, kind: input, shape index: {}]
  %s2 = inlined_call_operand.vmem [shape: f32[1,64], index: 2, kind: input, shape index: {}]
  %s3 = inlined_call_operand.vmem [shape: f32[200,64], index: 3, kind: output, shape index: {}]
  %s4 = sld [smem:[#allocation0]]
  $region22: #{tpu_custom_call.1} parent=0
    _
  %s6 = ssub.s32 1, %s4
  %s7 = scalar_select 0, %s6, %s4
  // Predicated region
  $region2: #{tpu_custom_call.1} parent=0 // pred_check
    _
  $region3: #{tpu_custom_call.1} parent=0 // pred_check_branch
    %9 = sbr.rel (0) target = $region5
  $region4: #{tpu_custom_call.1} parent=0 // pred_region
    _
  $region5: #{tpu_custom_call.1} parent=0 // pred_fallthru
    _
  // Predicated region
  $region6: #{tpu_custom_call.1} parent=0 // pred_check
    _
  $region7: #{tpu_custom_call.1} parent=0 // pred_check_branch
    %11 = sbr.rel (0) target = $region9
  $region8: #{tpu_custom_call.1} parent=0 // pred_region
    _
  $region9: #{tpu_custom_call.1} parent=0 // pred_fallthru
    _
  // Predicated region
  $region10: #{tpu_custom_call.1} parent=0 // pred_check
    _
  $region11: #{tpu_custom_call.1} parent=0 // pred_check_branch
    %13 = sbr.rel (0) target = $region13
  $region12: #{tpu_custom_call.1} parent=0 // pred_region
    _
  $region13: #{tpu_custom_call.1} parent=0 // pred_fallthru
    _
  %v14 = vld [vmem:[%s0] sm:$0xff]
  %v15 = vld [vmem:[%s0 + $0x8] sm:$0xff]
  %v16 = vld [vmem:[%s0 + $0x10] sm:$0xff]
  %v17 = vld [vmem:[%s0 + $0x18] sm:$0xff]
  %v18 = vld [vmem:[%s0 + $0x20] sm:$0xff]
  %v19 = vld [vmem:[%s0 + $0x28] sm:$0xff]
  %v20 = vld [vmem:[%s0 + $0x30] sm:$0xff]
  %v21 = vld [vmem:[%s0 + $0x38] sm:$0xff]
  %v22 = vld [vmem:[%s0 + $0x40] sm:$0xff]
  %v23 = vld [vmem:[%s0 + $0x48] sm:$0xff]
  %v24 = vld [vmem:[%s0 + $0x50] sm:$0xff]
  %v25 = vld [vmem:[%s0 + $0x58] sm:$0xff]
  %v26 = vld [vmem:[%s0 + $0x60] sm:$0xff]
  %v27 = vld [vmem:[%s0 + $0x68] sm:$0xff]
  %v28 = vld [vmem:[%s0 + $0x70] sm:$0xff]
  %v29 = vld [vmem:[%s0 + $0x78] sm:$0xff]
  %v30 = vld [vmem:[%s0 + $0x80] sm:$0xff]
  %v31 = vld [vmem:[%s0 + $0x88] sm:$0xff]
  %v32 = vld [vmem:[%s0 + $0x90] sm:$0xff]
  %v33 = vld [vmem:[%s0 + $0x98] sm:$0xff]
  %v34 = vld [vmem:[%s0 + $0xa0] sm:$0xff]
  %v35 = vld [vmem:[%s0 + $0xa8] sm:$0xff]
  %v36 = vld [vmem:[%s0 + $0xb0] sm:$0xff]
  %v37 = vld [vmem:[%s0 + $0xb8] sm:$0xff]
  %v38 = vld [vmem:[%s0 + $0xc0] sm:$0xff]
  %v39 = vld [vmem:[%s1] sm:$0xff]
  %v40 = vld [vmem:[%s1 + $0x8] sm:$0xff]
  %v41 = vld [vmem:[%s1 + $0x10] sm:$0xff]
  %v42 = vld [vmem:[%s1 + $0x18] sm:$0xff]
  %v43 = vld [vmem:[%s2] sm:$0x1]
  %v45 = vlaneseq
  %v46 = vshrl.u32 %v45, 7
  %v47 = vsub.s32 0, %v46
  %v48 = vrot.slane %v43, %v47
  %vm50 = vcmask 261120
  %v52 = vsel %vm50, %v14, 0
  %v55 = vsel %vm50, %v15, 0
  %v58 = vsel %vm50, %v16, 0
  %v61 = vsel %vm50, %v17, 0
  %v64 = vsel %vm50, %v18, 0
  %v67 = vsel %vm50, %v19, 0
  %v70 = vsel %vm50, %v20, 0
  %v73 = vsel %vm50, %v21, 0
  %v76 = vsel %vm50, %v22, 0
  %v79 = vsel %vm50, %v23, 0
  %v82 = vsel %vm50, %v24, 0
  %v85 = vsel %vm50, %v25, 0
  %v88 = vsel %vm50, %v26, 0
  %v91 = vsel %vm50, %v27, 0
  %v94 = vsel %vm50, %v28, 0
  %v97 = vsel %vm50, %v29, 0
  %v100 = vsel %vm50, %v30, 0
  %v103 = vsel %vm50, %v31, 0
  %v106 = vsel %vm50, %v32, 0
  %v109 = vsel %vm50, %v33, 0
  %v112 = vsel %vm50, %v34, 0
  %v115 = vsel %vm50, %v35, 0
  %v118 = vsel %vm50, %v36, 0
  %v121 = vsel %vm50, %v37, 0
  %v124 = vsel %vm50, %v38, 0
  %126 = vmatprep.subr.mxu0 0.0
  %127 = vmatpush1.msra.mxu0 0.0
  %128 = vmatprep.subr.mxu0 0.0
  %129 = vmatpush1.msra.mxu0 0.0
  %130 = vmatprep.subr.mxu0 0.0
  %131 = vmatpush1.msra.mxu0 0.0
  %132 = vmatprep.subr.mxu0 0.0
  %133 = vmatpush1.msra.mxu0 0.0
  %134 = vmatprep.subr.mxu0 0.0
  %135 = vmatpush1.msra.mxu0 0.0
  %136 = vmatprep.subr.mxu0 0.0
  %137 = vmatpush1.msra.mxu0 0.0
  %138 = vmatprep.subr.mxu0 0.0
  %139 = vmatpush1.msra.mxu0 0.0
  %140 = vmatprep.subr.mxu0 0.0
  %141 = vmatpush1.msra.mxu0 0.0
  %142 = vmatprep.subr.mxu0 0.0
  %143 = vmatpush1.msra.mxu0 0.0
  %144 = vmatprep.subr.mxu0 0.0
  %145 = vmatpush1.msra.mxu0 0.0
  %146 = vmatprep.subr.mxu0 0.0
  %147 = vmatpush1.msra.mxu0 0.0
  %148 = vmatprep.subr.mxu0 0.0
  %149 = vmatpush1.msra.mxu0 0.0
  %150 = vmatprep.subr.mxu0 0.0
  %151 = vmatpush1.msra.mxu0 %v42
  %152 = vmatprep.subr.mxu0 0.0
  %153 = vmatpush1.msra.mxu0 %v41
  %154 = vmatprep.subr.mxu0 0.0
  %155 = vmatpush1.msra.mxu0 %v40
  %156 = vmatprep.subr.mxu0 0.0
  %157 = vmatpush1.msra.mxu0 %v39
  %158 = vmatprep.subr.mxu0 0.0
  %159 = vmatpush2.msra.mxu0 0.0
  %160 = vmatprep.subr.mxu0 0.0
  %161 = vmatpush2.msra.mxu0 0.0
  %162 = vmatprep.subr.mxu0 0.0
  %163 = vmatpush2.msra.mxu0 0.0
  %164 = vmatprep.subr.mxu0 0.0
  %165 = vmatpush2.msra.mxu0 0.0
  %166 = vmatprep.subr.mxu0 0.0
  %167 = vmatpush2.msra.mxu0 0.0
  %168 = vmatprep.subr.mxu0 0.0
  %169 = vmatpush2.msra.mxu0 0.0
  %170 = vmatprep.subr.mxu0 0.0
  %171 = vmatpush2.msra.mxu0 0.0
  %172 = vmatprep.subr.mxu0 0.0
  %173 = vmatpush2.msra.mxu0 0.0
  %174 = vmatprep.subr.mxu0 0.0
  %175 = vmatpush2.msra.mxu0 0.0
  %176 = vmatprep.subr.mxu0 0.0
  %177 = vmatpush2.msra.mxu0 0.0
  %178 = vmatprep.subr.mxu0 0.0
  %179 = vmatpush2.msra.mxu0 0.0
  %180 = vmatprep.subr.mxu0 0.0
  %181 = vmatpush2.msra.mxu0 0.0
  %182 = vmatprep.subr.mxu0 0.0
  %183 = vmatpush2.msra.mxu0 0.0
  %184 = vmatprep.subr.mxu0 0.0
  %185 = vmatpush2.msra.mxu0 0.0
  %186 = vmatprep.subr.mxu0 0.0
  %187 = vmatpush2.msra.mxu0 0.0
  %188 = vmatprep.subr.mxu0 0.0
  %189 = vmatpush2.msra.mxu0 0.0
  %190 = vmatprep.mubr.f32.mxu0 0.0
  %191 = vmatmul.mubr.f32.gmra.mxu0 %v52
  %v192 = vpop.f32.mrf.mxu0
  %v193 = vadd.f32 %v48, %v192
  %v194 = vpop.f32.mrf.mxu0
  %195 = vmatprep.mubr.f32.mxu0 0.0
  %196 = vmatmul.mubr.f32.gmra.mxu0 %v55
  %v197 = vpop.f32.mrf.mxu0
  %v198 = vadd.f32 %v48, %v197
  %v199 = vpop.f32.mrf.mxu0
  %200 = vmatprep.mubr.f32.mxu0 0.0
  %201 = vmatmul.mubr.f32.gmra.mxu0 %v58
  %v202 = vpop.f32.mrf.mxu0
  %v203 = vadd.f32 %v48, %v202
  %v204 = vpop.f32.mrf.mxu0
  %205 = vmatprep.mubr.f32.mxu0 0.0
  %206 = vmatmul.mubr.f32.gmra.mxu0 %v61
  %v207 = vpop.f32.mrf.mxu0
  %v208 = vadd.f32 %v48, %v207
  %v209 = vpop.f32.mrf.mxu0
  %210 = vmatprep.mubr.f32.mxu0 0.0
  %211 = vmatmul.mubr.f32.gmra.mxu0 %v64
  %v212 = vpop.f32.mrf.mxu0
  %v213 = vadd.f32 %v48, %v212
  %v214 = vpop.f32.mrf.mxu0
  %215 = vmatprep.mubr.f32.mxu0 0.0
  %216 = vmatmul.mubr.f32.gmra.mxu0 %v67
  %v217 = vpop.f32.mrf.mxu0
  %v218 = vadd.f32 %v48, %v217
  %v219 = vpop.f32.mrf.mxu0
  %220 = vmatprep.mubr.f32.mxu0 0.0
  %221 = vmatmul.mubr.f32.gmra.mxu0 %v70
  %v222 = vpop.f32.mrf.mxu0
  %v223 = vadd.f32 %v48, %v222
  %v224 = vpop.f32.mrf.mxu0
  %225 = vmatprep.mubr.f32.mxu0 0.0
  %226 = vmatmul.mubr.f32.gmra.mxu0 %v73
  %v227 = vpop.f32.mrf.mxu0
  %v228 = vadd.f32 %v48, %v227
  %v229 = vpop.f32.mrf.mxu0
  %230 = vmatprep.mubr.f32.mxu0 0.0
  %231 = vmatmul.mubr.f32.gmra.mxu0 %v76
  %v232 = vpop.f32.mrf.mxu0
  %v233 = vadd.f32 %v48, %v232
  %v234 = vpop.f32.mrf.mxu0
  %235 = vmatprep.mubr.f32.mxu0 0.0
  %236 = vmatmul.mubr.f32.gmra.mxu0 %v79
  %v237 = vpop.f32.mrf.mxu0
  %v238 = vadd.f32 %v48, %v237
  %v239 = vpop.f32.mrf.mxu0
  %240 = vmatprep.mubr.f32.mxu0 0.0
  %241 = vmatmul.mubr.f32.gmra.mxu0 %v82
  %v242 = vpop.f32.mrf.mxu0
  %v243 = vadd.f32 %v48, %v242
  %v244 = vpop.f32.mrf.mxu0
  %245 = vmatprep.mubr.f32.mxu0 0.0
  %246 = vmatmul.mubr.f32.gmra.mxu0 %v85
  %v247 = vpop.f32.mrf.mxu0
  %v248 = vadd.f32 %v48, %v247
  %v249 = vpop.f32.mrf.mxu0
  %250 = vmatprep.mubr.f32.mxu0 0.0
  %251 = vmatmul.mubr.f32.gmra.mxu0 %v88
  %v252 = vpop.f32.mrf.mxu0
  %v253 = vadd.f32 %v48, %v252
  %v254 = vpop.f32.mrf.mxu0
  %255 = vmatprep.mubr.f32.mxu0 0.0
  %256 = vmatmul.mubr.f32.gmra.mxu0 %v91
  %v257 = vpop.f32.mrf.mxu0
  %v258 = vadd.f32 %v48, %v257
  %v259 = vpop.f32.mrf.mxu0
  %260 = vmatprep.mubr.f32.mxu0 0.0
  %261 = vmatmul.mubr.f32.gmra.mxu0 %v94
  %v262 = vpop.f32.mrf.mxu0
  %v263 = vadd.f32 %v48, %v262
  %v264 = vpop.f32.mrf.mxu0
  %265 = vmatprep.mubr.f32.mxu0 0.0
  %266 = vmatmul.mubr.f32.gmra.mxu0 %v97
  %v267 = vpop.f32.mrf.mxu0
  %v268 = vadd.f32 %v48, %v267
  %v269 = vpop.f32.mrf.mxu0
  %270 = vmatprep.mubr.f32.mxu0 0.0
  %271 = vmatmul.mubr.f32.gmra.mxu0 %v100
  %v272 = vpop.f32.mrf.mxu0
  %v273 = vadd.f32 %v48, %v272
  %v274 = vpop.f32.mrf.mxu0
  %275 = vmatprep.mubr.f32.mxu0 0.0
  %276 = vmatmul.mubr.f32.gmra.mxu0 %v103
  %v277 = vpop.f32.mrf.mxu0
  %v278 = vadd.f32 %v48, %v277
  %v279 = vpop.f32.mrf.mxu0
  %280 = vmatprep.mubr.f32.mxu0 0.0
  %281 = vmatmul.mubr.f32.gmra.mxu0 %v106
  %v282 = vpop.f32.mrf.mxu0
  %v283 = vadd.f32 %v48, %v282
  %v284 = vpop.f32.mrf.mxu0
  %285 = vmatprep.mubr.f32.mxu0 0.0
  %286 = vmatmul.mubr.f32.gmra.mxu0 %v109
  %v287 = vpop.f32.mrf.mxu0
  %v288 = vadd.f32 %v48, %v287
  %v289 = vpop.f32.mrf.mxu0
  %290 = vmatprep.mubr.f32.mxu0 0.0
  %291 = vmatmul.mubr.f32.gmra.mxu0 %v112
  %v292 = vpop.f32.mrf.mxu0
  %v293 = vadd.f32 %v48, %v292
  %v294 = vpop.f32.mrf.mxu0
  %295 = vmatprep.mubr.f32.mxu0 0.0
  %296 = vmatmul.mubr.f32.gmra.mxu0 %v115
  %v297 = vpop.f32.mrf.mxu0
  %v298 = vadd.f32 %v48, %v297
  %v299 = vpop.f32.mrf.mxu0
  %300 = vmatprep.mubr.f32.mxu0 0.0
  %301 = vmatmul.mubr.f32.gmra.mxu0 %v118
  %v302 = vpop.f32.mrf.mxu0
  %v303 = vadd.f32 %v48, %v302
  %v304 = vpop.f32.mrf.mxu0
  %305 = vmatprep.mubr.f32.mxu0 0.0
  %306 = vmatmul.mubr.f32.gmra.mxu0 %v121
  %v307 = vpop.f32.mrf.mxu0
  %v308 = vadd.f32 %v48, %v307
  %v309 = vpop.f32.mrf.mxu0
  %310 = vmatprep.mubr.f32.mxu0 0.0
  %311 = vmatmul.mubr.f32.gmra.mxu0 %v124
  %v312 = vpop.f32.mrf.mxu0
  %v313 = vadd.f32 %v48, %v312
  %v314 = vpop.f32.mrf.mxu0
  %315 = vdwg.mxu0
  %v316 = vmul.f32 %v193, 30.0
  %v317 = vmul.f32 %v198, 30.0
  %v318 = vmul.f32 %v203, 30.0
  %v319 = vmul.f32 %v208, 30.0
  %v320 = vmul.f32 %v213, 30.0
  %v321 = vmul.f32 %v218, 30.0
  %v322 = vmul.f32 %v223, 30.0
  %v323 = vmul.f32 %v228, 30.0
  %v324 = vmul.f32 %v233, 30.0
  %v325 = vmul.f32 %v238, 30.0
  %v326 = vmul.f32 %v243, 30.0
  %v327 = vmul.f32 %v248, 30.0
  %v328 = vmul.f32 %v253, 30.0
  %v329 = vmul.f32 %v258, 30.0
  %v330 = vmul.f32 %v263, 30.0
  %v331 = vmul.f32 %v268, 30.0
  %v332 = vmul.f32 %v273, 30.0
  %v333 = vmul.f32 %v278, 30.0
  %v334 = vmul.f32 %v283, 30.0
  %v335 = vmul.f32 %v288, 30.0
  %v336 = vmul.f32 %v293, 30.0
  %v337 = vmul.f32 %v298, 30.0
  %v338 = vmul.f32 %v303, 30.0
  %v339 = vmul.f32 %v308, 30.0
  %v340 = vmul.f32 %v313, 30.0
  %v341 = vand.u32 2147483647, %v316
  %vm342 = vcmp.le.f32.partialorder %v341, 0.7853982
  %vm343 = vcmp.lt.s32.totalorder %v316, 0
  %v344 = vand.u32 %v316, 2139095040
  %v345 = vshrl.u32 %v344, 23
  %v346 = vsub.s32 %v345, 127
  %v347 = vand.u32 2147483647, %v316
  %v348 = vand.u32 %v347, 8388607
  %v349 = vor.u32 %v348, 8388608
  %v350 = vsub.s32 0, %v349
  %v351 = vadd.s32 %v346, 1
  %vm352 = vcmp.gt.s32.totalorder %v351, 0
  %v353 = vsel %vm352, %v351, 0
  %v354 = vshrl.u32 %v353, 5
  %v355 = vand.u32 %v353, 31
  %v356 = vsub.s32 32, %v355
  %v357 = vshrl.u32 683565275, %v356
  %v358 = vshll.u32 683565275, %v355
  %v359 = vshrl.u32 2475754826, %v356
  %v360 = vor.u32 %v358, %v359
  %v361 = vshll.u32 2475754826, %v355
  %v362 = vshrl.u32 2131351028, %v356
  %v363 = vor.u32 %v361, %v362
  %v364 = vshll.u32 2131351028, %v355
  %v365 = vshrl.u32 2102212464, %v356
  %v366 = vor.u32 %v364, %v365
  %v367 = vshll.u32 2102212464, %v355
  %v368 = vshrl.u32 920167782, %v356
  %v369 = vor.u32 %v367, %v368
  %v370 = vshll.u32 920167782, %v355
  %v371 = vshrl.u32 1326507024, %v356
  %v372 = vor.u32 %v370, %v371
  %vm373 = vcmp.lt.s32.totalorder %v354, 1
  %vm374 = vcmp.lt.s32.totalorder %v354, 2
  %vm375 = vcmp.lt.s32.totalorder %v354, 3
  %vm376 = vcmp.lt.s32.totalorder %v354, 4
  %v377 = vsel %vm373, %v357, %v360
  %v378 = vsel %vm376, %v366, 2102212464
  %v379 = vsel %vm375, %v363, %v378
  %v380 = vsel %vm374, %v377, %v379
  %v381 = vsel %vm373, %v360, %v363
  %v382 = vsel %vm376, %v369, 920167782
  %v383 = vsel %vm375, %v366, %v382
  %v384 = vsel %vm374, %v381, %v383
  %v385 = vsel %vm373, %v363, %v366
  %v386 = vsel %vm376, %v372, 1326507024
  %v387 = vsel %vm375, %v369, %v386
  %v388 = vsel %vm374, %v385, %v387
  %v389 = vshll.u32 %v349, 8
  %v390 = vmul.u32.u64.compose %v389, %v388
  %v391 = vextract.low.u32 %v390
  %v392 = vextract.high.u32 %v390
  %v393 = vmul.u32.u64.compose %v389, %v384
  %v394 = vextract.low.u32 %v393
  %v395 = vextract.high.u32 %v393
  %v396 = vmul.u32 %v389, %v380
  %v397 = vadd.s32 %v392, %v394
  %vm398 = vc.u32 %v392, %v394
  %v399 = vadd.s32 %v395, 1
  %v400 = vsel %vm398, %v399, %v395
  %v401 = vadd.s32 %v396, %v400
  %v402 = vadd.s32 %v401, 536870912
  %v403 = vshrl.u32 %v402, 30
  %v404 = vshll.u32 %v403, 30
  %v405 = vsub.s32 %v401, %v404
  %vm406 = vcmp.lt.s32.totalorder %v405, 0
  %v407 = vsub.s32 0, %v405
  %v408 = vsel %vm406, %v407, %v405
  %v409 = vclz %v408
  %v410 = vsub.s32 %v409, 2
  %vm411 = vcmp.gt.s32.totalorder 0, %v410
  %v412 = vsel %vm411, 0, %v410
  %v413 = vsub.s32 32, %v412
  %v414 = vshll.u32 %v405, %v412
  %v415 = vshrl.u32 %v397, %v413
  %v416 = vor.u32 %v414, %v415
  %v417 = vsub.s32 4294967266, %v412
  %v418 = vadd.s32 %v417, 127
  %v419 = vshll.u32 %v418, 23
  %v420 = vor.u32 4788187, %v419
  %v421 = vand.u32 2147483647, %v420
  %v423 = vcvt.s32.f32 %v416
  %v424 = vmul.f32 %v423, %v421
  %v425 = vxor.u32 %v424, 2147483648
  %v426 = vsel %vm343, %v425, %v424
  %v427 = vsub.s32 4, %v403
  %v428 = vsel %vm343, %v427, %v403
  %v429 = vsel %vm342, %v316, %v426
  %v430 = vsel %vm342, 0, %v428
  %v431 = vcosq.f32.pop %v429
  %v432 = vsinq.f32.pop %v429
  %vm433 = vweird.f32 %v316
  %v434 = vadd.s32 %v430, 3
  %v435 = vand.u32 %v434, 3
  %vm436 = vcmp.lt.s32.totalorder %v435, 2
  %vm437 = vcmp.eq.s32.totalorder %v435, 0
  %v438 = vxor.u32 %v432, 2147483648
  %v439 = vsel %vm437, %v431, %v438
  %vm440 = vcmp.eq.s32.totalorder %v435, 2
  %v441 = vxor.u32 %v431, 2147483648
  %v442 = vsel %vm440, %v441, %v432
  %v443 = vsel %vm436, %v439, %v442
  %v444 = vsel %vm433, nan, %v443
  %v445 = vand.u32 2147483647, %v317
  %vm446 = vcmp.le.f32.partialorder %v445, 0.7853982
  %vm447 = vcmp.lt.s32.totalorder %v317, 0
  %v448 = vand.u32 %v317, 2139095040
  %v449 = vshrl.u32 %v448, 23
  %v450 = vsub.s32 %v449, 127
  %v451 = vand.u32 2147483647, %v317
  %v452 = vand.u32 %v451, 8388607
  %v453 = vor.u32 %v452, 8388608
  %v454 = vsub.s32 0, %v453
  %v455 = vadd.s32 %v450, 1
  %vm456 = vcmp.gt.s32.totalorder %v455, 0
  %v457 = vsel %vm456, %v455, 0
  %v458 = vshrl.u32 %v457, 5
  %v459 = vand.u32 %v457, 31
  %v460 = vsub.s32 32, %v459
  %v461 = vshrl.u32 683565275, %v460
  %v462 = vshll.u32 683565275, %v459
  %v463 = vshrl.u32 2475754826, %v460
  %v464 = vor.u32 %v462, %v463
  %v465 = vshll.u32 2475754826, %v459
  %v466 = vshrl.u32 2131351028, %v460
  %v467 = vor.u32 %v465, %v466
  %v468 = vshll.u32 2131351028, %v459
  %v469 = vshrl.u32 2102212464, %v460
  %v470 = vor.u32 %v468, %v469
  %v471 = vshll.u32 2102212464, %v459
  %v472 = vshrl.u32 920167782, %v460
  %v473 = vor.u32 %v471, %v472
  %v474 = vshll.u32 920167782, %v459
  %v475 = vshrl.u32 1326507024, %v460
  %v476 = vor.u32 %v474, %v475
  %vm477 = vcmp.lt.s32.totalorder %v458, 1
  %vm478 = vcmp.lt.s32.totalorder %v458, 2
  %vm479 = vcmp.lt.s32.totalorder %v458, 3
  %vm480 = vcmp.lt.s32.totalorder %v458, 4
  %v481 = vsel %vm477, %v461, %v464
  %v482 = vsel %vm480, %v470, 2102212464
  %v483 = vsel %vm479, %v467, %v482
  %v484 = vsel %vm478, %v481, %v483
  %v485 = vsel %vm477, %v464, %v467
  %v486 = vsel %vm480, %v473, 920167782
  %v487 = vsel %vm479, %v470, %v486
  %v488 = vsel %vm478, %v485, %v487
  %v489 = vsel %vm477, %v467, %v470
  %v490 = vsel %vm480, %v476, 1326507024
  %v491 = vsel %vm479, %v473, %v490
  %v492 = vsel %vm478, %v489, %v491
  %v493 = vshll.u32 %v453, 8
  %v494 = vmul.u32.u64.compose %v493, %v492
  %v495 = vextract.low.u32 %v494
  %v496 = vextract.high.u32 %v494
  %v497 = vmul.u32.u64.compose %v493, %v488
  %v498 = vextract.low.u32 %v497
  %v499 = vextract.high.u32 %v497
  %v500 = vmul.u32 %v493, %v484
  %v501 = vadd.s32 %v496, %v498
  %vm502 = vc.u32 %v496, %v498
  %v503 = vadd.s32 %v499, 1
  %v504 = vsel %vm502, %v503, %v499
  %v505 = vadd.s32 %v500, %v504
  %v506 = vadd.s32 %v505, 536870912
  %v507 = vshrl.u32 %v506, 30
  %v508 = vshll.u32 %v507, 30
  %v509 = vsub.s32 %v505, %v508
  %vm510 = vcmp.lt.s32.totalorder %v509, 0
  %v511 = vsub.s32 0, %v509
  %v512 = vsel %vm510, %v511, %v509
  %v513 = vclz %v512
  %v514 = vsub.s32 %v513, 2
  %vm515 = vcmp.gt.s32.totalorder 0, %v514
  %v516 = vsel %vm515, 0, %v514
  %v517 = vsub.s32 32, %v516
  %v518 = vshll.u32 %v509, %v516
  %v519 = vshrl.u32 %v501, %v517
  %v520 = vor.u32 %v518, %v519
  %v521 = vsub.s32 4294967266, %v516
  %v522 = vadd.s32 %v521, 127
  %v523 = vshll.u32 %v522, 23
  %v524 = vor.u32 4788187, %v523
  %v525 = vand.u32 2147483647, %v524
  %v527 = vcvt.s32.f32 %v520
  %v528 = vmul.f32 %v527, %v525
  %v529 = vxor.u32 %v528, 2147483648
  %v530 = vsel %vm447, %v529, %v528
  %v531 = vsub.s32 4, %v507
  %v532 = vsel %vm447, %v531, %v507
  %v533 = vsel %vm446, %v317, %v530
  %v534 = vsel %vm446, 0, %v532
  %v535 = vcosq.f32.pop %v533
  %v536 = vsinq.f32.pop %v533
  %vm537 = vweird.f32 %v317
  %v538 = vadd.s32 %v534, 3
  %v539 = vand.u32 %v538, 3
  %vm540 = vcmp.lt.s32.totalorder %v539, 2
  %vm541 = vcmp.eq.s32.totalorder %v539, 0
  %v542 = vxor.u32 %v536, 2147483648
  %v543 = vsel %vm541, %v535, %v542
  %vm544 = vcmp.eq.s32.totalorder %v539, 2
  %v545 = vxor.u32 %v535, 2147483648
  %v546 = vsel %vm544, %v545, %v536
  %v547 = vsel %vm540, %v543, %v546
  %v548 = vsel %vm537, nan, %v547
  %v549 = vand.u32 2147483647, %v318
  %vm550 = vcmp.le.f32.partialorder %v549, 0.7853982
  %vm551 = vcmp.lt.s32.totalorder %v318, 0
  %v552 = vand.u32 %v318, 2139095040
  %v553 = vshrl.u32 %v552, 23
  %v554 = vsub.s32 %v553, 127
  %v555 = vand.u32 2147483647, %v318
  %v556 = vand.u32 %v555, 8388607
  %v557 = vor.u32 %v556, 8388608
  %v558 = vsub.s32 0, %v557
  %v559 = vadd.s32 %v554, 1
  %vm560 = vcmp.gt.s32.totalorder %v559, 0
  %v561 = vsel %vm560, %v559, 0
  %v562 = vshrl.u32 %v561, 5
  %v563 = vand.u32 %v561, 31
  %v564 = vsub.s32 32, %v563
  %v565 = vshrl.u32 683565275, %v564
  %v566 = vshll.u32 683565275, %v563
  %v567 = vshrl.u32 2475754826, %v564
  %v568 = vor.u32 %v566, %v567
  %v569 = vshll.u32 2475754826, %v563
  %v570 = vshrl.u32 2131351028, %v564
  %v571 = vor.u32 %v569, %v570
  %v572 = vshll.u32 2131351028, %v563
  %v573 = vshrl.u32 2102212464, %v564
  %v574 = vor.u32 %v572, %v573
  %v575 = vshll.u32 2102212464, %v563
  %v576 = vshrl.u32 920167782, %v564
  %v577 = vor.u32 %v575, %v576
  %v578 = vshll.u32 920167782, %v563
  %v579 = vshrl.u32 1326507024, %v564
  %v580 = vor.u32 %v578, %v579
  %vm581 = vcmp.lt.s32.totalorder %v562, 1
  %vm582 = vcmp.lt.s32.totalorder %v562, 2
  %vm583 = vcmp.lt.s32.totalorder %v562, 3
  %vm584 = vcmp.lt.s32.totalorder %v562, 4
  %v585 = vsel %vm581, %v565, %v568
  %v586 = vsel %vm584, %v574, 2102212464
  %v587 = vsel %vm583, %v571, %v586
  %v588 = vsel %vm582, %v585, %v587
  %v589 = vsel %vm581, %v568, %v571
  %v590 = vsel %vm584, %v577, 920167782
  %v591 = vsel %vm583, %v574, %v590
  %v592 = vsel %vm582, %v589, %v591
  %v593 = vsel %vm581, %v571, %v574
  %v594 = vsel %vm584, %v580, 1326507024
  %v595 = vsel %vm583, %v577, %v594
  %v596 = vsel %vm582, %v593, %v595
  %v597 = vshll.u32 %v557, 8
  %v598 = vmul.u32.u64.compose %v597, %v596
  %v599 = vextract.low.u32 %v598
  %v600 = vextract.high.u32 %v598
  %v601 = vmul.u32.u64.compose %v597, %v592
  %v602 = vextract.low.u32 %v601
  %v603 = vextract.high.u32 %v601
  %v604 = vmul.u32 %v597, %v588
  %v605 = vadd.s32 %v600, %v602
  %vm606 = vc.u32 %v600, %v602
  %v607 = vadd.s32 %v603, 1
  %v608 = vsel %vm606, %v607, %v603
  %v609 = vadd.s32 %v604, %v608
  %v610 = vadd.s32 %v609, 536870912
  %v611 = vshrl.u32 %v610, 30
  %v612 = vshll.u32 %v611, 30
  %v613 = vsub.s32 %v609, %v612
  %vm614 = vcmp.lt.s32.totalorder %v613, 0
  %v615 = vsub.s32 0, %v613
  %v616 = vsel %vm614, %v615, %v613
  %v617 = vclz %v616
  %v618 = vsub.s32 %v617, 2
  %vm619 = vcmp.gt.s32.totalorder 0, %v618
  %v620 = vsel %vm619, 0, %v618
  %v621 = vsub.s32 32, %v620
  %v622 = vshll.u32 %v613, %v620
  %v623 = vshrl.u32 %v605, %v621
  %v624 = vor.u32 %v622, %v623
  %v625 = vsub.s32 4294967266, %v620
  %v626 = vadd.s32 %v625, 127
  %v627 = vshll.u32 %v626, 23
  %v628 = vor.u32 4788187, %v627
  %v629 = vand.u32 2147483647, %v628
  %v631 = vcvt.s32.f32 %v624
  %v632 = vmul.f32 %v631, %v629
  %v633 = vxor.u32 %v632, 2147483648
  %v634 = vsel %vm551, %v633, %v632
  %v635 = vsub.s32 4, %v611
  %v636 = vsel %vm551, %v635, %v611
  %v637 = vsel %vm550, %v318, %v634
  %v638 = vsel %vm550, 0, %v636
  %v639 = vcosq.f32.pop %v637
  %v640 = vsinq.f32.pop %v637
  %vm641 = vweird.f32 %v318
  %v642 = vadd.s32 %v638, 3
  %v643 = vand.u32 %v642, 3
  %vm644 = vcmp.lt.s32.totalorder %v643, 2
  %vm645 = vcmp.eq.s32.totalorder %v643, 0
  %v646 = vxor.u32 %v640, 2147483648
  %v647 = vsel %vm645, %v639, %v646
  %vm648 = vcmp.eq.s32.totalorder %v643, 2
  %v649 = vxor.u32 %v639, 2147483648
  %v650 = vsel %vm648, %v649, %v640
  %v651 = vsel %vm644, %v647, %v650
  %v652 = vsel %vm641, nan, %v651
  %v653 = vand.u32 2147483647, %v319
  %vm654 = vcmp.le.f32.partialorder %v653, 0.7853982
  %vm655 = vcmp.lt.s32.totalorder %v319, 0
  %v656 = vand.u32 %v319, 2139095040
  %v657 = vshrl.u32 %v656, 23
  %v658 = vsub.s32 %v657, 127
  %v659 = vand.u32 2147483647, %v319
  %v660 = vand.u32 %v659, 8388607
  %v661 = vor.u32 %v660, 8388608
  %v662 = vsub.s32 0, %v661
  %v663 = vadd.s32 %v658, 1
  %vm664 = vcmp.gt.s32.totalorder %v663, 0
  %v665 = vsel %vm664, %v663, 0
  %v666 = vshrl.u32 %v665, 5
  %v667 = vand.u32 %v665, 31
  %v668 = vsub.s32 32, %v667
  %v669 = vshrl.u32 683565275, %v668
  %v670 = vshll.u32 683565275, %v667
  %v671 = vshrl.u32 2475754826, %v668
  %v672 = vor.u32 %v670, %v671
  %v673 = vshll.u32 2475754826, %v667
  %v674 = vshrl.u32 2131351028, %v668
  %v675 = vor.u32 %v673, %v674
  %v676 = vshll.u32 2131351028, %v667
  %v677 = vshrl.u32 2102212464, %v668
  %v678 = vor.u32 %v676, %v677
  %v679 = vshll.u32 2102212464, %v667
  %v680 = vshrl.u32 920167782, %v668
  %v681 = vor.u32 %v679, %v680
  %v682 = vshll.u32 920167782, %v667
  %v683 = vshrl.u32 1326507024, %v668
  %v684 = vor.u32 %v682, %v683
  %vm685 = vcmp.lt.s32.totalorder %v666, 1
  %vm686 = vcmp.lt.s32.totalorder %v666, 2
  %vm687 = vcmp.lt.s32.totalorder %v666, 3
  %vm688 = vcmp.lt.s32.totalorder %v666, 4
  %v689 = vsel %vm685, %v669, %v672
  %v690 = vsel %vm688, %v678, 2102212464
  %v691 = vsel %vm687, %v675, %v690
  %v692 = vsel %vm686, %v689, %v691
  %v693 = vsel %vm685, %v672, %v675
  %v694 = vsel %vm688, %v681, 920167782
  %v695 = vsel %vm687, %v678, %v694
  %v696 = vsel %vm686, %v693, %v695
  %v697 = vsel %vm685, %v675, %v678
  %v698 = vsel %vm688, %v684, 1326507024
  %v699 = vsel %vm687, %v681, %v698
  %v700 = vsel %vm686, %v697, %v699
  %v701 = vshll.u32 %v661, 8
  %v702 = vmul.u32.u64.compose %v701, %v700
  %v703 = vextract.low.u32 %v702
  %v704 = vextract.high.u32 %v702
  %v705 = vmul.u32.u64.compose %v701, %v696
  %v706 = vextract.low.u32 %v705
  %v707 = vextract.high.u32 %v705
  %v708 = vmul.u32 %v701, %v692
  %v709 = vadd.s32 %v704, %v706
  %vm710 = vc.u32 %v704, %v706
  %v711 = vadd.s32 %v707, 1
  %v712 = vsel %vm710, %v711, %v707
  %v713 = vadd.s32 %v708, %v712
  %v714 = vadd.s32 %v713, 536870912
  %v715 = vshrl.u32 %v714, 30
  %v716 = vshll.u32 %v715, 30
  %v717 = vsub.s32 %v713, %v716
  %vm718 = vcmp.lt.s32.totalorder %v717, 0
  %v719 = vsub.s32 0, %v717
  %v720 = vsel %vm718, %v719, %v717
  %v721 = vclz %v720
  %v722 = vsub.s32 %v721, 2
  %vm723 = vcmp.gt.s32.totalorder 0, %v722
  %v724 = vsel %vm723, 0, %v722
  %v725 = vsub.s32 32, %v724
  %v726 = vshll.u32 %v717, %v724
  %v727 = vshrl.u32 %v709, %v725
  %v728 = vor.u32 %v726, %v727
  %v729 = vsub.s32 4294967266, %v724
  %v730 = vadd.s32 %v729, 127
  %v731 = vshll.u32 %v730, 23
  %v732 = vor.u32 4788187, %v731
  %v733 = vand.u32 2147483647, %v732
  %v735 = vcvt.s32.f32 %v728
  %v736 = vmul.f32 %v735, %v733
  %v737 = vxor.u32 %v736, 2147483648
  %v738 = vsel %vm655, %v737, %v736
  %v739 = vsub.s32 4, %v715
  %v740 = vsel %vm655, %v739, %v715
  %v741 = vsel %vm654, %v319, %v738
  %v742 = vsel %vm654, 0, %v740
  %v743 = vcosq.f32.pop %v741
  %v744 = vsinq.f32.pop %v741
  %vm745 = vweird.f32 %v319
  %v746 = vadd.s32 %v742, 3
  %v747 = vand.u32 %v746, 3
  %vm748 = vcmp.lt.s32.totalorder %v747, 2
  %vm749 = vcmp.eq.s32.totalorder %v747, 0
  %v750 = vxor.u32 %v744, 2147483648
  %v751 = vsel %vm749, %v743, %v750
  %vm752 = vcmp.eq.s32.totalorder %v747, 2
  %v753 = vxor.u32 %v743, 2147483648
  %v754 = vsel %vm752, %v753, %v744
  %v755 = vsel %vm748, %v751, %v754
  %v756 = vsel %vm745, nan, %v755
  %v757 = vand.u32 2147483647, %v320
  %vm758 = vcmp.le.f32.partialorder %v757, 0.7853982
  %vm759 = vcmp.lt.s32.totalorder %v320, 0
  %v760 = vand.u32 %v320, 2139095040
  %v761 = vshrl.u32 %v760, 23
  %v762 = vsub.s32 %v761, 127
  %v763 = vand.u32 2147483647, %v320
  %v764 = vand.u32 %v763, 8388607
  %v765 = vor.u32 %v764, 8388608
  %v766 = vsub.s32 0, %v765
  %v767 = vadd.s32 %v762, 1
  %vm768 = vcmp.gt.s32.totalorder %v767, 0
  %v769 = vsel %vm768, %v767, 0
  %v770 = vshrl.u32 %v769, 5
  %v771 = vand.u32 %v769, 31
  %v772 = vsub.s32 32, %v771
  %v773 = vshrl.u32 683565275, %v772
  %v774 = vshll.u32 683565275, %v771
  %v775 = vshrl.u32 2475754826, %v772
  %v776 = vor.u32 %v774, %v775
  %v777 = vshll.u32 2475754826, %v771
  %v778 = vshrl.u32 2131351028, %v772
  %v779 = vor.u32 %v777, %v778
  %v780 = vshll.u32 2131351028, %v771
  %v781 = vshrl.u32 2102212464, %v772
  %v782 = vor.u32 %v780, %v781
  %v783 = vshll.u32 2102212464, %v771
  %v784 = vshrl.u32 920167782, %v772
  %v785 = vor.u32 %v783, %v784
  %v786 = vshll.u32 920167782, %v771
  %v787 = vshrl.u32 1326507024, %v772
  %v788 = vor.u32 %v786, %v787
  %vm789 = vcmp.lt.s32.totalorder %v770, 1
  %vm790 = vcmp.lt.s32.totalorder %v770, 2
  %vm791 = vcmp.lt.s32.totalorder %v770, 3
  %vm792 = vcmp.lt.s32.totalorder %v770, 4
  %v793 = vsel %vm789, %v773, %v776
  %v794 = vsel %vm792, %v782, 2102212464
  %v795 = vsel %vm791, %v779, %v794
  %v796 = vsel %vm790, %v793, %v795
  %v797 = vsel %vm789, %v776, %v779
  %v798 = vsel %vm792, %v785, 920167782
  %v799 = vsel %vm791, %v782, %v798
  %v800 = vsel %vm790, %v797, %v799
  %v801 = vsel %vm789, %v779, %v782
  %v802 = vsel %vm792, %v788, 1326507024
  %v803 = vsel %vm791, %v785, %v802
  %v804 = vsel %vm790, %v801, %v803
  %v805 = vshll.u32 %v765, 8
  %v806 = vmul.u32.u64.compose %v805, %v804
  %v807 = vextract.low.u32 %v806
  %v808 = vextract.high.u32 %v806
  %v809 = vmul.u32.u64.compose %v805, %v800
  %v810 = vextract.low.u32 %v809
  %v811 = vextract.high.u32 %v809
  %v812 = vmul.u32 %v805, %v796
  %v813 = vadd.s32 %v808, %v810
  %vm814 = vc.u32 %v808, %v810
  %v815 = vadd.s32 %v811, 1
  %v816 = vsel %vm814, %v815, %v811
  %v817 = vadd.s32 %v812, %v816
  %v818 = vadd.s32 %v817, 536870912
  %v819 = vshrl.u32 %v818, 30
  %v820 = vshll.u32 %v819, 30
  %v821 = vsub.s32 %v817, %v820
  %vm822 = vcmp.lt.s32.totalorder %v821, 0
  %v823 = vsub.s32 0, %v821
  %v824 = vsel %vm822, %v823, %v821
  %v825 = vclz %v824
  %v826 = vsub.s32 %v825, 2
  %vm827 = vcmp.gt.s32.totalorder 0, %v826
  %v828 = vsel %vm827, 0, %v826
  %v829 = vsub.s32 32, %v828
  %v830 = vshll.u32 %v821, %v828
  %v831 = vshrl.u32 %v813, %v829
  %v832 = vor.u32 %v830, %v831
  %v833 = vsub.s32 4294967266, %v828
  %v834 = vadd.s32 %v833, 127
  %v835 = vshll.u32 %v834, 23
  %v836 = vor.u32 4788187, %v835
  %v837 = vand.u32 2147483647, %v836
  %v839 = vcvt.s32.f32 %v832
  %v840 = vmul.f32 %v839, %v837
  %v841 = vxor.u32 %v840, 2147483648
  %v842 = vsel %vm759, %v841, %v840
  %v843 = vsub.s32 4, %v819
  %v844 = vsel %vm759, %v843, %v819
  %v845 = vsel %vm758, %v320, %v842
  %v846 = vsel %vm758, 0, %v844
  %v847 = vcosq.f32.pop %v845
  %v848 = vsinq.f32.pop %v845
  %vm849 = vweird.f32 %v320
  %v850 = vadd.s32 %v846, 3
  %v851 = vand.u32 %v850, 3
  %vm852 = vcmp.lt.s32.totalorder %v851, 2
  %vm853 = vcmp.eq.s32.totalorder %v851, 0
  %v854 = vxor.u32 %v848, 2147483648
  %v855 = vsel %vm853, %v847, %v854
  %vm856 = vcmp.eq.s32.totalorder %v851, 2
  %v857 = vxor.u32 %v847, 2147483648
  %v858 = vsel %vm856, %v857, %v848
  %v859 = vsel %vm852, %v855, %v858
  %v860 = vsel %vm849, nan, %v859
  %v861 = vand.u32 2147483647, %v321
  %vm862 = vcmp.le.f32.partialorder %v861, 0.7853982
  %vm863 = vcmp.lt.s32.totalorder %v321, 0
  %v864 = vand.u32 %v321, 2139095040
  %v865 = vshrl.u32 %v864, 23
  %v866 = vsub.s32 %v865, 127
  %v867 = vand.u32 2147483647, %v321
  %v868 = vand.u32 %v867, 8388607
  %v869 = vor.u32 %v868, 8388608
  %v870 = vsub.s32 0, %v869
  %v871 = vadd.s32 %v866, 1
  %vm872 = vcmp.gt.s32.totalorder %v871, 0
  %v873 = vsel %vm872, %v871, 0
  %v874 = vshrl.u32 %v873, 5
  %v875 = vand.u32 %v873, 31
  %v876 = vsub.s32 32, %v875
  %v877 = vshrl.u32 683565275, %v876
  %v878 = vshll.u32 683565275, %v875
  %v879 = vshrl.u32 2475754826, %v876
  %v880 = vor.u32 %v878, %v879
  %v881 = vshll.u32 2475754826, %v875
  %v882 = vshrl.u32 2131351028, %v876
  %v883 = vor.u32 %v881, %v882
  %v884 = vshll.u32 2131351028, %v875
  %v885 = vshrl.u32 2102212464, %v876
  %v886 = vor.u32 %v884, %v885
  %v887 = vshll.u32 2102212464, %v875
  %v888 = vshrl.u32 920167782, %v876
  %v889 = vor.u32 %v887, %v888
  %v890 = vshll.u32 920167782, %v875
  %v891 = vshrl.u32 1326507024, %v876
  %v892 = vor.u32 %v890, %v891
  %vm893 = vcmp.lt.s32.totalorder %v874, 1
  %vm894 = vcmp.lt.s32.totalorder %v874, 2
  %vm895 = vcmp.lt.s32.totalorder %v874, 3
  %vm896 = vcmp.lt.s32.totalorder %v874, 4
  %v897 = vsel %vm893, %v877, %v880
  %v898 = vsel %vm896, %v886, 2102212464
  %v899 = vsel %vm895, %v883, %v898
  %v900 = vsel %vm894, %v897, %v899
  %v901 = vsel %vm893, %v880, %v883
  %v902 = vsel %vm896, %v889, 920167782
  %v903 = vsel %vm895, %v886, %v902
  %v904 = vsel %vm894, %v901, %v903
  %v905 = vsel %vm893, %v883, %v886
  %v906 = vsel %vm896, %v892, 1326507024
  %v907 = vsel %vm895, %v889, %v906
  %v908 = vsel %vm894, %v905, %v907
  %v909 = vshll.u32 %v869, 8
  %v910 = vmul.u32.u64.compose %v909, %v908
  %v911 = vextract.low.u32 %v910
  %v912 = vextract.high.u32 %v910
  %v913 = vmul.u32.u64.compose %v909, %v904
  %v914 = vextract.low.u32 %v913
  %v915 = vextract.high.u32 %v913
  %v916 = vmul.u32 %v909, %v900
  %v917 = vadd.s32 %v912, %v914
  %vm918 = vc.u32 %v912, %v914
  %v919 = vadd.s32 %v915, 1
  %v920 = vsel %vm918, %v919, %v915
  %v921 = vadd.s32 %v916, %v920
  %v922 = vadd.s32 %v921, 536870912
  %v923 = vshrl.u32 %v922, 30
  %v924 = vshll.u32 %v923, 30
  %v925 = vsub.s32 %v921, %v924
  %vm926 = vcmp.lt.s32.totalorder %v925, 0
  %v927 = vsub.s32 0, %v925
  %v928 = vsel %vm926, %v927, %v925
  %v929 = vclz %v928
  %v930 = vsub.s32 %v929, 2
  %vm931 = vcmp.gt.s32.totalorder 0, %v930
  %v932 = vsel %vm931, 0, %v930
  %v933 = vsub.s32 32, %v932
  %v934 = vshll.u32 %v925, %v932
  %v935 = vshrl.u32 %v917, %v933
  %v936 = vor.u32 %v934, %v935
  %v937 = vsub.s32 4294967266, %v932
  %v938 = vadd.s32 %v937, 127
  %v939 = vshll.u32 %v938, 23
  %v940 = vor.u32 4788187, %v939
  %v941 = vand.u32 2147483647, %v940
  %v943 = vcvt.s32.f32 %v936
  %v944 = vmul.f32 %v943, %v941
  %v945 = vxor.u32 %v944, 2147483648
  %v946 = vsel %vm863, %v945, %v944
  %v947 = vsub.s32 4, %v923
  %v948 = vsel %vm863, %v947, %v923
  %v949 = vsel %vm862, %v321, %v946
  %v950 = vsel %vm862, 0, %v948
  %v951 = vcosq.f32.pop %v949
  %v952 = vsinq.f32.pop %v949
  %vm953 = vweird.f32 %v321
  %v954 = vadd.s32 %v950, 3
  %v955 = vand.u32 %v954, 3
  %vm956 = vcmp.lt.s32.totalorder %v955, 2
  %vm957 = vcmp.eq.s32.totalorder %v955, 0
  %v958 = vxor.u32 %v952, 2147483648
  %v959 = vsel %vm957, %v951, %v958
  %vm960 = vcmp.eq.s32.totalorder %v955, 2
  %v961 = vxor.u32 %v951, 2147483648
  %v962 = vsel %vm960, %v961, %v952
  %v963 = vsel %vm956, %v959, %v962
  %v964 = vsel %vm953, nan, %v963
  %v965 = vand.u32 2147483647, %v322
  %vm966 = vcmp.le.f32.partialorder %v965, 0.7853982
  %vm967 = vcmp.lt.s32.totalorder %v322, 0
  %v968 = vand.u32 %v322, 2139095040
  %v969 = vshrl.u32 %v968, 23
  %v970 = vsub.s32 %v969, 127
  %v971 = vand.u32 2147483647, %v322
  %v972 = vand.u32 %v971, 8388607
  %v973 = vor.u32 %v972, 8388608
  %v974 = vsub.s32 0, %v973
  %v975 = vadd.s32 %v970, 1
  %vm976 = vcmp.gt.s32.totalorder %v975, 0
  %v977 = vsel %vm976, %v975, 0
  %v978 = vshrl.u32 %v977, 5
  %v979 = vand.u32 %v977, 31
  %v980 = vsub.s32 32, %v979
  %v981 = vshrl.u32 683565275, %v980
  %v982 = vshll.u32 683565275, %v979
  %v983 = vshrl.u32 2475754826, %v980
  %v984 = vor.u32 %v982, %v983
  %v985 = vshll.u32 2475754826, %v979
  %v986 = vshrl.u32 2131351028, %v980
  %v987 = vor.u32 %v985, %v986
  %v988 = vshll.u32 2131351028, %v979
  %v989 = vshrl.u32 2102212464, %v980
  %v990 = vor.u32 %v988, %v989
  %v991 = vshll.u32 2102212464, %v979
  %v992 = vshrl.u32 920167782, %v980
  %v993 = vor.u32 %v991, %v992
  %v994 = vshll.u32 920167782, %v979
  %v995 = vshrl.u32 1326507024, %v980
  %v996 = vor.u32 %v994, %v995
  %vm997 = vcmp.lt.s32.totalorder %v978, 1
  %vm998 = vcmp.lt.s32.totalorder %v978, 2
  %vm999 = vcmp.lt.s32.totalorder %v978, 3
  %vm1000 = vcmp.lt.s32.totalorder %v978, 4
  %v1001 = vsel %vm997, %v981, %v984
  %v1002 = vsel %vm1000, %v990, 2102212464
  %v1003 = vsel %vm999, %v987, %v1002
  %v1004 = vsel %vm998, %v1001, %v1003
  %v1005 = vsel %vm997, %v984, %v987
  %v1006 = vsel %vm1000, %v993, 920167782
  %v1007 = vsel %vm999, %v990, %v1006
  %v1008 = vsel %vm998, %v1005, %v1007
  %v1009 = vsel %vm997, %v987, %v990
  %v1010 = vsel %vm1000, %v996, 1326507024
  %v1011 = vsel %vm999, %v993, %v1010
  %v1012 = vsel %vm998, %v1009, %v1011
  %v1013 = vshll.u32 %v973, 8
  %v1014 = vmul.u32.u64.compose %v1013, %v1012
  %v1015 = vextract.low.u32 %v1014
  %v1016 = vextract.high.u32 %v1014
  %v1017 = vmul.u32.u64.compose %v1013, %v1008
  %v1018 = vextract.low.u32 %v1017
  %v1019 = vextract.high.u32 %v1017
  %v1020 = vmul.u32 %v1013, %v1004
  %v1021 = vadd.s32 %v1016, %v1018
  %vm1022 = vc.u32 %v1016, %v1018
  %v1023 = vadd.s32 %v1019, 1
  %v1024 = vsel %vm1022, %v1023, %v1019
  %v1025 = vadd.s32 %v1020, %v1024
  %v1026 = vadd.s32 %v1025, 536870912
  %v1027 = vshrl.u32 %v1026, 30
  %v1028 = vshll.u32 %v1027, 30
  %v1029 = vsub.s32 %v1025, %v1028
  %vm1030 = vcmp.lt.s32.totalorder %v1029, 0
  %v1031 = vsub.s32 0, %v1029
  %v1032 = vsel %vm1030, %v1031, %v1029
  %v1033 = vclz %v1032
  %v1034 = vsub.s32 %v1033, 2
  %vm1035 = vcmp.gt.s32.totalorder 0, %v1034
  %v1036 = vsel %vm1035, 0, %v1034
  %v1037 = vsub.s32 32, %v1036
  %v1038 = vshll.u32 %v1029, %v1036
  %v1039 = vshrl.u32 %v1021, %v1037
  %v1040 = vor.u32 %v1038, %v1039
  %v1041 = vsub.s32 4294967266, %v1036
  %v1042 = vadd.s32 %v1041, 127
  %v1043 = vshll.u32 %v1042, 23
  %v1044 = vor.u32 4788187, %v1043
  %v1045 = vand.u32 2147483647, %v1044
  %v1047 = vcvt.s32.f32 %v1040
  %v1048 = vmul.f32 %v1047, %v1045
  %v1049 = vxor.u32 %v1048, 2147483648
  %v1050 = vsel %vm967, %v1049, %v1048
  %v1051 = vsub.s32 4, %v1027
  %v1052 = vsel %vm967, %v1051, %v1027
  %v1053 = vsel %vm966, %v322, %v1050
  %v1054 = vsel %vm966, 0, %v1052
  %v1055 = vcosq.f32.pop %v1053
  %v1056 = vsinq.f32.pop %v1053
  %vm1057 = vweird.f32 %v322
  %v1058 = vadd.s32 %v1054, 3
  %v1059 = vand.u32 %v1058, 3
  %vm1060 = vcmp.lt.s32.totalorder %v1059, 2
  %vm1061 = vcmp.eq.s32.totalorder %v1059, 0
  %v1062 = vxor.u32 %v1056, 2147483648
  %v1063 = vsel %vm1061, %v1055, %v1062
  %vm1064 = vcmp.eq.s32.totalorder %v1059, 2
  %v1065 = vxor.u32 %v1055, 2147483648
  %v1066 = vsel %vm1064, %v1065, %v1056
  %v1067 = vsel %vm1060, %v1063, %v1066
  %v1068 = vsel %vm1057, nan, %v1067
  %v1069 = vand.u32 2147483647, %v323
  %vm1070 = vcmp.le.f32.partialorder %v1069, 0.7853982
  %vm1071 = vcmp.lt.s32.totalorder %v323, 0
  %v1072 = vand.u32 %v323, 2139095040
  %v1073 = vshrl.u32 %v1072, 23
  %v1074 = vsub.s32 %v1073, 127
  %v1075 = vand.u32 2147483647, %v323
  %v1076 = vand.u32 %v1075, 8388607
  %v1077 = vor.u32 %v1076, 8388608
  %v1078 = vsub.s32 0, %v1077
  %v1079 = vadd.s32 %v1074, 1
  %vm1080 = vcmp.gt.s32.totalorder %v1079, 0
  %v1081 = vsel %vm1080, %v1079, 0
  %v1082 = vshrl.u32 %v1081, 5
  %v1083 = vand.u32 %v1081, 31
  %v1084 = vsub.s32 32, %v1083
  %v1085 = vshrl.u32 683565275, %v1084
  %v1086 = vshll.u32 683565275, %v1083
  %v1087 = vshrl.u32 2475754826, %v1084
  %v1088 = vor.u32 %v1086, %v1087
  %v1089 = vshll.u32 2475754826, %v1083
  %v1090 = vshrl.u32 2131351028, %v1084
  %v1091 = vor.u32 %v1089, %v1090
  %v1092 = vshll.u32 2131351028, %v1083
  %v1093 = vshrl.u32 2102212464, %v1084
  %v1094 = vor.u32 %v1092, %v1093
  %v1095 = vshll.u32 2102212464, %v1083
  %v1096 = vshrl.u32 920167782, %v1084
  %v1097 = vor.u32 %v1095, %v1096
  %v1098 = vshll.u32 920167782, %v1083
  %v1099 = vshrl.u32 1326507024, %v1084
  %v1100 = vor.u32 %v1098, %v1099
  %vm1101 = vcmp.lt.s32.totalorder %v1082, 1
  %vm1102 = vcmp.lt.s32.totalorder %v1082, 2
  %vm1103 = vcmp.lt.s32.totalorder %v1082, 3
  %vm1104 = vcmp.lt.s32.totalorder %v1082, 4
  %v1105 = vsel %vm1101, %v1085, %v1088
  %v1106 = vsel %vm1104, %v1094, 2102212464
  %v1107 = vsel %vm1103, %v1091, %v1106
  %v1108 = vsel %vm1102, %v1105, %v1107
  %v1109 = vsel %vm1101, %v1088, %v1091
  %v1110 = vsel %vm1104, %v1097, 920167782
  %v1111 = vsel %vm1103, %v1094, %v1110
  %v1112 = vsel %vm1102, %v1109, %v1111
  %v1113 = vsel %vm1101, %v1091, %v1094
  %v1114 = vsel %vm1104, %v1100, 1326507024
  %v1115 = vsel %vm1103, %v1097, %v1114
  %v1116 = vsel %vm1102, %v1113, %v1115
  %v1117 = vshll.u32 %v1077, 8
  %v1118 = vmul.u32.u64.compose %v1117, %v1116
  %v1119 = vextract.low.u32 %v1118
  %v1120 = vextract.high.u32 %v1118
  %v1121 = vmul.u32.u64.compose %v1117, %v1112
  %v1122 = vextract.low.u32 %v1121
  %v1123 = vextract.high.u32 %v1121
  %v1124 = vmul.u32 %v1117, %v1108
  %v1125 = vadd.s32 %v1120, %v1122
  %vm1126 = vc.u32 %v1120, %v1122
  %v1127 = vadd.s32 %v1123, 1
  %v1128 = vsel %vm1126, %v1127, %v1123
  %v1129 = vadd.s32 %v1124, %v1128
  %v1130 = vadd.s32 %v1129, 536870912
  %v1131 = vshrl.u32 %v1130, 30
  %v1132 = vshll.u32 %v1131, 30
  %v1133 = vsub.s32 %v1129, %v1132
  %vm1134 = vcmp.lt.s32.totalorder %v1133, 0
  %v1135 = vsub.s32 0, %v1133
  %v1136 = vsel %vm1134, %v1135, %v1133
  %v1137 = vclz %v1136
  %v1138 = vsub.s32 %v1137, 2
  %vm1139 = vcmp.gt.s32.totalorder 0, %v1138
  %v1140 = vsel %vm1139, 0, %v1138
  %v1141 = vsub.s32 32, %v1140
  %v1142 = vshll.u32 %v1133, %v1140
  %v1143 = vshrl.u32 %v1125, %v1141
  %v1144 = vor.u32 %v1142, %v1143
  %v1145 = vsub.s32 4294967266, %v1140
  %v1146 = vadd.s32 %v1145, 127
  %v1147 = vshll.u32 %v1146, 23
  %v1148 = vor.u32 4788187, %v1147
  %v1149 = vand.u32 2147483647, %v1148
  %v1151 = vcvt.s32.f32 %v1144
  %v1152 = vmul.f32 %v1151, %v1149
  %v1153 = vxor.u32 %v1152, 2147483648
  %v1154 = vsel %vm1071, %v1153, %v1152
  %v1155 = vsub.s32 4, %v1131
  %v1156 = vsel %vm1071, %v1155, %v1131
  %v1157 = vsel %vm1070, %v323, %v1154
  %v1158 = vsel %vm1070, 0, %v1156
  %v1159 = vcosq.f32.pop %v1157
  %v1160 = vsinq.f32.pop %v1157
  %vm1161 = vweird.f32 %v323
  %v1162 = vadd.s32 %v1158, 3
  %v1163 = vand.u32 %v1162, 3
  %vm1164 = vcmp.lt.s32.totalorder %v1163, 2
  %vm1165 = vcmp.eq.s32.totalorder %v1163, 0
  %v1166 = vxor.u32 %v1160, 2147483648
  %v1167 = vsel %vm1165, %v1159, %v1166
  %vm1168 = vcmp.eq.s32.totalorder %v1163, 2
  %v1169 = vxor.u32 %v1159, 2147483648
  %v1170 = vsel %vm1168, %v1169, %v1160
  %v1171 = vsel %vm1164, %v1167, %v1170
  %v1172 = vsel %vm1161, nan, %v1171
  %v1173 = vand.u32 2147483647, %v324
  %vm1174 = vcmp.le.f32.partialorder %v1173, 0.7853982
  %vm1175 = vcmp.lt.s32.totalorder %v324, 0
  %v1176 = vand.u32 %v324, 2139095040
  %v1177 = vshrl.u32 %v1176, 23
  %v1178 = vsub.s32 %v1177, 127
  %v1179 = vand.u32 2147483647, %v324
  %v1180 = vand.u32 %v1179, 8388607
  %v1181 = vor.u32 %v1180, 8388608
  %v1182 = vsub.s32 0, %v1181
  %v1183 = vadd.s32 %v1178, 1
  %vm1184 = vcmp.gt.s32.totalorder %v1183, 0
  %v1185 = vsel %vm1184, %v1183, 0
  %v1186 = vshrl.u32 %v1185, 5
  %v1187 = vand.u32 %v1185, 31
  %v1188 = vsub.s32 32, %v1187
  %v1189 = vshrl.u32 683565275, %v1188
  %v1190 = vshll.u32 683565275, %v1187
  %v1191 = vshrl.u32 2475754826, %v1188
  %v1192 = vor.u32 %v1190, %v1191
  %v1193 = vshll.u32 2475754826, %v1187
  %v1194 = vshrl.u32 2131351028, %v1188
  %v1195 = vor.u32 %v1193, %v1194
  %v1196 = vshll.u32 2131351028, %v1187
  %v1197 = vshrl.u32 2102212464, %v1188
  %v1198 = vor.u32 %v1196, %v1197
  %v1199 = vshll.u32 2102212464, %v1187
  %v1200 = vshrl.u32 920167782, %v1188
  %v1201 = vor.u32 %v1199, %v1200
  %v1202 = vshll.u32 920167782, %v1187
  %v1203 = vshrl.u32 1326507024, %v1188
  %v1204 = vor.u32 %v1202, %v1203
  %vm1205 = vcmp.lt.s32.totalorder %v1186, 1
  %vm1206 = vcmp.lt.s32.totalorder %v1186, 2
  %vm1207 = vcmp.lt.s32.totalorder %v1186, 3
  %vm1208 = vcmp.lt.s32.totalorder %v1186, 4
  %v1209 = vsel %vm1205, %v1189, %v1192
  %v1210 = vsel %vm1208, %v1198, 2102212464
  %v1211 = vsel %vm1207, %v1195, %v1210
  %v1212 = vsel %vm1206, %v1209, %v1211
  %v1213 = vsel %vm1205, %v1192, %v1195
  %v1214 = vsel %vm1208, %v1201, 920167782
  %v1215 = vsel %vm1207, %v1198, %v1214
  %v1216 = vsel %vm1206, %v1213, %v1215
  %v1217 = vsel %vm1205, %v1195, %v1198
  %v1218 = vsel %vm1208, %v1204, 1326507024
  %v1219 = vsel %vm1207, %v1201, %v1218
  %v1220 = vsel %vm1206, %v1217, %v1219
  %v1221 = vshll.u32 %v1181, 8
  %v1222 = vmul.u32.u64.compose %v1221, %v1220
  %v1223 = vextract.low.u32 %v1222
  %v1224 = vextract.high.u32 %v1222
  %v1225 = vmul.u32.u64.compose %v1221, %v1216
  %v1226 = vextract.low.u32 %v1225
  %v1227 = vextract.high.u32 %v1225
  %v1228 = vmul.u32 %v1221, %v1212
  %v1229 = vadd.s32 %v1224, %v1226
  %vm1230 = vc.u32 %v1224, %v1226
  %v1231 = vadd.s32 %v1227, 1
  %v1232 = vsel %vm1230, %v1231, %v1227
  %v1233 = vadd.s32 %v1228, %v1232
  %v1234 = vadd.s32 %v1233, 536870912
  %v1235 = vshrl.u32 %v1234, 30
  %v1236 = vshll.u32 %v1235, 30
  %v1237 = vsub.s32 %v1233, %v1236
  %vm1238 = vcmp.lt.s32.totalorder %v1237, 0
  %v1239 = vsub.s32 0, %v1237
  %v1240 = vsel %vm1238, %v1239, %v1237
  %v1241 = vclz %v1240
  %v1242 = vsub.s32 %v1241, 2
  %vm1243 = vcmp.gt.s32.totalorder 0, %v1242
  %v1244 = vsel %vm1243, 0, %v1242
  %v1245 = vsub.s32 32, %v1244
  %v1246 = vshll.u32 %v1237, %v1244
  %v1247 = vshrl.u32 %v1229, %v1245
  %v1248 = vor.u32 %v1246, %v1247
  %v1249 = vsub.s32 4294967266, %v1244
  %v1250 = vadd.s32 %v1249, 127
  %v1251 = vshll.u32 %v1250, 23
  %v1252 = vor.u32 4788187, %v1251
  %v1253 = vand.u32 2147483647, %v1252
  %v1255 = vcvt.s32.f32 %v1248
  %v1256 = vmul.f32 %v1255, %v1253
  %v1257 = vxor.u32 %v1256, 2147483648
  %v1258 = vsel %vm1175, %v1257, %v1256
  %v1259 = vsub.s32 4, %v1235
  %v1260 = vsel %vm1175, %v1259, %v1235
  %v1261 = vsel %vm1174, %v324, %v1258
  %v1262 = vsel %vm1174, 0, %v1260
  %v1263 = vcosq.f32.pop %v1261
  %v1264 = vsinq.f32.pop %v1261
  %vm1265 = vweird.f32 %v324
  %v1266 = vadd.s32 %v1262, 3
  %v1267 = vand.u32 %v1266, 3
  %vm1268 = vcmp.lt.s32.totalorder %v1267, 2
  %vm1269 = vcmp.eq.s32.totalorder %v1267, 0
  %v1270 = vxor.u32 %v1264, 2147483648
  %v1271 = vsel %vm1269, %v1263, %v1270
  %vm1272 = vcmp.eq.s32.totalorder %v1267, 2
  %v1273 = vxor.u32 %v1263, 2147483648
  %v1274 = vsel %vm1272, %v1273, %v1264
  %v1275 = vsel %vm1268, %v1271, %v1274
  %v1276 = vsel %vm1265, nan, %v1275
  %v1277 = vand.u32 2147483647, %v325
  %vm1278 = vcmp.le.f32.partialorder %v1277, 0.7853982
  %vm1279 = vcmp.lt.s32.totalorder %v325, 0
  %v1280 = vand.u32 %v325, 2139095040
  %v1281 = vshrl.u32 %v1280, 23
  %v1282 = vsub.s32 %v1281, 127
  %v1283 = vand.u32 2147483647, %v325
  %v1284 = vand.u32 %v1283, 8388607
  %v1285 = vor.u32 %v1284, 8388608
  %v1286 = vsub.s32 0, %v1285
  %v1287 = vadd.s32 %v1282, 1
  %vm1288 = vcmp.gt.s32.totalorder %v1287, 0
  %v1289 = vsel %vm1288, %v1287, 0
  %v1290 = vshrl.u32 %v1289, 5
  %v1291 = vand.u32 %v1289, 31
  %v1292 = vsub.s32 32, %v1291
  %v1293 = vshrl.u32 683565275, %v1292
  %v1294 = vshll.u32 683565275, %v1291
  %v1295 = vshrl.u32 2475754826, %v1292
  %v1296 = vor.u32 %v1294, %v1295
  %v1297 = vshll.u32 2475754826, %v1291
  %v1298 = vshrl.u32 2131351028, %v1292
  %v1299 = vor.u32 %v1297, %v1298
  %v1300 = vshll.u32 2131351028, %v1291
  %v1301 = vshrl.u32 2102212464, %v1292
  %v1302 = vor.u32 %v1300, %v1301
  %v1303 = vshll.u32 2102212464, %v1291
  %v1304 = vshrl.u32 920167782, %v1292
  %v1305 = vor.u32 %v1303, %v1304
  %v1306 = vshll.u32 920167782, %v1291
  %v1307 = vshrl.u32 1326507024, %v1292
  %v1308 = vor.u32 %v1306, %v1307
  %vm1309 = vcmp.lt.s32.totalorder %v1290, 1
  %vm1310 = vcmp.lt.s32.totalorder %v1290, 2
  %vm1311 = vcmp.lt.s32.totalorder %v1290, 3
  %vm1312 = vcmp.lt.s32.totalorder %v1290, 4
  %v1313 = vsel %vm1309, %v1293, %v1296
  %v1314 = vsel %vm1312, %v1302, 2102212464
  %v1315 = vsel %vm1311, %v1299, %v1314
  %v1316 = vsel %vm1310, %v1313, %v1315
  %v1317 = vsel %vm1309, %v1296, %v1299
  %v1318 = vsel %vm1312, %v1305, 920167782
  %v1319 = vsel %vm1311, %v1302, %v1318
  %v1320 = vsel %vm1310, %v1317, %v1319
  %v1321 = vsel %vm1309, %v1299, %v1302
  %v1322 = vsel %vm1312, %v1308, 1326507024
  %v1323 = vsel %vm1311, %v1305, %v1322
  %v1324 = vsel %vm1310, %v1321, %v1323
  %v1325 = vshll.u32 %v1285, 8
  %v1326 = vmul.u32.u64.compose %v1325, %v1324
  %v1327 = vextract.low.u32 %v1326
  %v1328 = vextract.high.u32 %v1326
  %v1329 = vmul.u32.u64.compose %v1325, %v1320
  %v1330 = vextract.low.u32 %v1329
  %v1331 = vextract.high.u32 %v1329
  %v1332 = vmul.u32 %v1325, %v1316
  %v1333 = vadd.s32 %v1328, %v1330
  %vm1334 = vc.u32 %v1328, %v1330
  %v1335 = vadd.s32 %v1331, 1
  %v1336 = vsel %vm1334, %v1335, %v1331
  %v1337 = vadd.s32 %v1332, %v1336
  %v1338 = vadd.s32 %v1337, 536870912
  %v1339 = vshrl.u32 %v1338, 30
  %v1340 = vshll.u32 %v1339, 30
  %v1341 = vsub.s32 %v1337, %v1340
  %vm1342 = vcmp.lt.s32.totalorder %v1341, 0
  %v1343 = vsub.s32 0, %v1341
  %v1344 = vsel %vm1342, %v1343, %v1341
  %v1345 = vclz %v1344
  %v1346 = vsub.s32 %v1345, 2
  %vm1347 = vcmp.gt.s32.totalorder 0, %v1346
  %v1348 = vsel %vm1347, 0, %v1346
  %v1349 = vsub.s32 32, %v1348
  %v1350 = vshll.u32 %v1341, %v1348
  %v1351 = vshrl.u32 %v1333, %v1349
  %v1352 = vor.u32 %v1350, %v1351
  %v1353 = vsub.s32 4294967266, %v1348
  %v1354 = vadd.s32 %v1353, 127
  %v1355 = vshll.u32 %v1354, 23
  %v1356 = vor.u32 4788187, %v1355
  %v1357 = vand.u32 2147483647, %v1356
  %v1359 = vcvt.s32.f32 %v1352
  %v1360 = vmul.f32 %v1359, %v1357
  %v1361 = vxor.u32 %v1360, 2147483648
  %v1362 = vsel %vm1279, %v1361, %v1360
  %v1363 = vsub.s32 4, %v1339
  %v1364 = vsel %vm1279, %v1363, %v1339
  %v1365 = vsel %vm1278, %v325, %v1362
  %v1366 = vsel %vm1278, 0, %v1364
  %v1367 = vcosq.f32.pop %v1365
  %v1368 = vsinq.f32.pop %v1365
  %vm1369 = vweird.f32 %v325
  %v1370 = vadd.s32 %v1366, 3
  %v1371 = vand.u32 %v1370, 3
  %vm1372 = vcmp.lt.s32.totalorder %v1371, 2
  %vm1373 = vcmp.eq.s32.totalorder %v1371, 0
  %v1374 = vxor.u32 %v1368, 2147483648
  %v1375 = vsel %vm1373, %v1367, %v1374
  %vm1376 = vcmp.eq.s32.totalorder %v1371, 2
  %v1377 = vxor.u32 %v1367, 2147483648
  %v1378 = vsel %vm1376, %v1377, %v1368
  %v1379 = vsel %vm1372, %v1375, %v1378
  %v1380 = vsel %vm1369, nan, %v1379
  %v1381 = vand.u32 2147483647, %v326
  %vm1382 = vcmp.le.f32.partialorder %v1381, 0.7853982
  %vm1383 = vcmp.lt.s32.totalorder %v326, 0
  %v1384 = vand.u32 %v326, 2139095040
  %v1385 = vshrl.u32 %v1384, 23
  %v1386 = vsub.s32 %v1385, 127
  %v1387 = vand.u32 2147483647, %v326
  %v1388 = vand.u32 %v1387, 8388607
  %v1389 = vor.u32 %v1388, 8388608
  %v1390 = vsub.s32 0, %v1389
  %v1391 = vadd.s32 %v1386, 1
  %vm1392 = vcmp.gt.s32.totalorder %v1391, 0
  %v1393 = vsel %vm1392, %v1391, 0
  %v1394 = vshrl.u32 %v1393, 5
  %v1395 = vand.u32 %v1393, 31
  %v1396 = vsub.s32 32, %v1395
  %v1397 = vshrl.u32 683565275, %v1396
  %v1398 = vshll.u32 683565275, %v1395
  %v1399 = vshrl.u32 2475754826, %v1396
  %v1400 = vor.u32 %v1398, %v1399
  %v1401 = vshll.u32 2475754826, %v1395
  %v1402 = vshrl.u32 2131351028, %v1396
  %v1403 = vor.u32 %v1401, %v1402
  %v1404 = vshll.u32 2131351028, %v1395
  %v1405 = vshrl.u32 2102212464, %v1396
  %v1406 = vor.u32 %v1404, %v1405
  %v1407 = vshll.u32 2102212464, %v1395
  %v1408 = vshrl.u32 920167782, %v1396
  %v1409 = vor.u32 %v1407, %v1408
  %v1410 = vshll.u32 920167782, %v1395
  %v1411 = vshrl.u32 1326507024, %v1396
  %v1412 = vor.u32 %v1410, %v1411
  %vm1413 = vcmp.lt.s32.totalorder %v1394, 1
  %vm1414 = vcmp.lt.s32.totalorder %v1394, 2
  %vm1415 = vcmp.lt.s32.totalorder %v1394, 3
  %vm1416 = vcmp.lt.s32.totalorder %v1394, 4
  %v1417 = vsel %vm1413, %v1397, %v1400
  %v1418 = vsel %vm1416, %v1406, 2102212464
  %v1419 = vsel %vm1415, %v1403, %v1418
  %v1420 = vsel %vm1414, %v1417, %v1419
  %v1421 = vsel %vm1413, %v1400, %v1403
  %v1422 = vsel %vm1416, %v1409, 920167782
  %v1423 = vsel %vm1415, %v1406, %v1422
  %v1424 = vsel %vm1414, %v1421, %v1423
  %v1425 = vsel %vm1413, %v1403, %v1406
  %v1426 = vsel %vm1416, %v1412, 1326507024
  %v1427 = vsel %vm1415, %v1409, %v1426
  %v1428 = vsel %vm1414, %v1425, %v1427
  %v1429 = vshll.u32 %v1389, 8
  %v1430 = vmul.u32.u64.compose %v1429, %v1428
  %v1431 = vextract.low.u32 %v1430
  %v1432 = vextract.high.u32 %v1430
  %v1433 = vmul.u32.u64.compose %v1429, %v1424
  %v1434 = vextract.low.u32 %v1433
  %v1435 = vextract.high.u32 %v1433
  %v1436 = vmul.u32 %v1429, %v1420
  %v1437 = vadd.s32 %v1432, %v1434
  %vm1438 = vc.u32 %v1432, %v1434
  %v1439 = vadd.s32 %v1435, 1
  %v1440 = vsel %vm1438, %v1439, %v1435
  %v1441 = vadd.s32 %v1436, %v1440
  %v1442 = vadd.s32 %v1441, 536870912
  %v1443 = vshrl.u32 %v1442, 30
  %v1444 = vshll.u32 %v1443, 30
  %v1445 = vsub.s32 %v1441, %v1444
  %vm1446 = vcmp.lt.s32.totalorder %v1445, 0
  %v1447 = vsub.s32 0, %v1445
  %v1448 = vsel %vm1446, %v1447, %v1445
  %v1449 = vclz %v1448
  %v1450 = vsub.s32 %v1449, 2
  %vm1451 = vcmp.gt.s32.totalorder 0, %v1450
  %v1452 = vsel %vm1451, 0, %v1450
  %v1453 = vsub.s32 32, %v1452
  %v1454 = vshll.u32 %v1445, %v1452
  %v1455 = vshrl.u32 %v1437, %v1453
  %v1456 = vor.u32 %v1454, %v1455
  %v1457 = vsub.s32 4294967266, %v1452
  %v1458 = vadd.s32 %v1457, 127
  %v1459 = vshll.u32 %v1458, 23
  %v1460 = vor.u32 4788187, %v1459
  %v1461 = vand.u32 2147483647, %v1460
  %v1463 = vcvt.s32.f32 %v1456
  %v1464 = vmul.f32 %v1463, %v1461
  %v1465 = vxor.u32 %v1464, 2147483648
  %v1466 = vsel %vm1383, %v1465, %v1464
  %v1467 = vsub.s32 4, %v1443
  %v1468 = vsel %vm1383, %v1467, %v1443
  %v1469 = vsel %vm1382, %v326, %v1466
  %v1470 = vsel %vm1382, 0, %v1468
  %v1471 = vcosq.f32.pop %v1469
  %v1472 = vsinq.f32.pop %v1469
  %vm1473 = vweird.f32 %v326
  %v1474 = vadd.s32 %v1470, 3
  %v1475 = vand.u32 %v1474, 3
  %vm1476 = vcmp.lt.s32.totalorder %v1475, 2
  %vm1477 = vcmp.eq.s32.totalorder %v1475, 0
  %v1478 = vxor.u32 %v1472, 2147483648
  %v1479 = vsel %vm1477, %v1471, %v1478
  %vm1480 = vcmp.eq.s32.totalorder %v1475, 2
  %v1481 = vxor.u32 %v1471, 2147483648
  %v1482 = vsel %vm1480, %v1481, %v1472
  %v1483 = vsel %vm1476, %v1479, %v1482
  %v1484 = vsel %vm1473, nan, %v1483
  %v1485 = vand.u32 2147483647, %v327
  %vm1486 = vcmp.le.f32.partialorder %v1485, 0.7853982
  %vm1487 = vcmp.lt.s32.totalorder %v327, 0
  %v1488 = vand.u32 %v327, 2139095040
  %v1489 = vshrl.u32 %v1488, 23
  %v1490 = vsub.s32 %v1489, 127
  %v1491 = vand.u32 2147483647, %v327
  %v1492 = vand.u32 %v1491, 8388607
  %v1493 = vor.u32 %v1492, 8388608
  %v1494 = vsub.s32 0, %v1493
  %v1495 = vadd.s32 %v1490, 1
  %vm1496 = vcmp.gt.s32.totalorder %v1495, 0
  %v1497 = vsel %vm1496, %v1495, 0
  %v1498 = vshrl.u32 %v1497, 5
  %v1499 = vand.u32 %v1497, 31
  %v1500 = vsub.s32 32, %v1499
  %v1501 = vshrl.u32 683565275, %v1500
  %v1502 = vshll.u32 683565275, %v1499
  %v1503 = vshrl.u32 2475754826, %v1500
  %v1504 = vor.u32 %v1502, %v1503
  %v1505 = vshll.u32 2475754826, %v1499
  %v1506 = vshrl.u32 2131351028, %v1500
  %v1507 = vor.u32 %v1505, %v1506
  %v1508 = vshll.u32 2131351028, %v1499
  %v1509 = vshrl.u32 2102212464, %v1500
  %v1510 = vor.u32 %v1508, %v1509
  %v1511 = vshll.u32 2102212464, %v1499
  %v1512 = vshrl.u32 920167782, %v1500
  %v1513 = vor.u32 %v1511, %v1512
  %v1514 = vshll.u32 920167782, %v1499
  %v1515 = vshrl.u32 1326507024, %v1500
  %v1516 = vor.u32 %v1514, %v1515
  %vm1517 = vcmp.lt.s32.totalorder %v1498, 1
  %vm1518 = vcmp.lt.s32.totalorder %v1498, 2
  %vm1519 = vcmp.lt.s32.totalorder %v1498, 3
  %vm1520 = vcmp.lt.s32.totalorder %v1498, 4
  %v1521 = vsel %vm1517, %v1501, %v1504
  %v1522 = vsel %vm1520, %v1510, 2102212464
  %v1523 = vsel %vm1519, %v1507, %v1522
  %v1524 = vsel %vm1518, %v1521, %v1523
  %v1525 = vsel %vm1517, %v1504, %v1507
  %v1526 = vsel %vm1520, %v1513, 920167782
  %v1527 = vsel %vm1519, %v1510, %v1526
  %v1528 = vsel %vm1518, %v1525, %v1527
  %v1529 = vsel %vm1517, %v1507, %v1510
  %v1530 = vsel %vm1520, %v1516, 1326507024
  %v1531 = vsel %vm1519, %v1513, %v1530
  %v1532 = vsel %vm1518, %v1529, %v1531
  %v1533 = vshll.u32 %v1493, 8
  %v1534 = vmul.u32.u64.compose %v1533, %v1532
  %v1535 = vextract.low.u32 %v1534
  %v1536 = vextract.high.u32 %v1534
  %v1537 = vmul.u32.u64.compose %v1533, %v1528
  %v1538 = vextract.low.u32 %v1537
  %v1539 = vextract.high.u32 %v1537
  %v1540 = vmul.u32 %v1533, %v1524
  %v1541 = vadd.s32 %v1536, %v1538
  %vm1542 = vc.u32 %v1536, %v1538
  %v1543 = vadd.s32 %v1539, 1
  %v1544 = vsel %vm1542, %v1543, %v1539
  %v1545 = vadd.s32 %v1540, %v1544
  %v1546 = vadd.s32 %v1545, 536870912
  %v1547 = vshrl.u32 %v1546, 30
  %v1548 = vshll.u32 %v1547, 30
  %v1549 = vsub.s32 %v1545, %v1548
  %vm1550 = vcmp.lt.s32.totalorder %v1549, 0
  %v1551 = vsub.s32 0, %v1549
  %v1552 = vsel %vm1550, %v1551, %v1549
  %v1553 = vclz %v1552
  %v1554 = vsub.s32 %v1553, 2
  %vm1555 = vcmp.gt.s32.totalorder 0, %v1554
  %v1556 = vsel %vm1555, 0, %v1554
  %v1557 = vsub.s32 32, %v1556
  %v1558 = vshll.u32 %v1549, %v1556
  %v1559 = vshrl.u32 %v1541, %v1557
  %v1560 = vor.u32 %v1558, %v1559
  %v1561 = vsub.s32 4294967266, %v1556
  %v1562 = vadd.s32 %v1561, 127
  %v1563 = vshll.u32 %v1562, 23
  %v1564 = vor.u32 4788187, %v1563
  %v1565 = vand.u32 2147483647, %v1564
  %v1567 = vcvt.s32.f32 %v1560
  %v1568 = vmul.f32 %v1567, %v1565
  %v1569 = vxor.u32 %v1568, 2147483648
  %v1570 = vsel %vm1487, %v1569, %v1568
  %v1571 = vsub.s32 4, %v1547
  %v1572 = vsel %vm1487, %v1571, %v1547
  %v1573 = vsel %vm1486, %v327, %v1570
  %v1574 = vsel %vm1486, 0, %v1572
  %v1575 = vcosq.f32.pop %v1573
  %v1576 = vsinq.f32.pop %v1573
  %vm1577 = vweird.f32 %v327
  %v1578 = vadd.s32 %v1574, 3
  %v1579 = vand.u32 %v1578, 3
  %vm1580 = vcmp.lt.s32.totalorder %v1579, 2
  %vm1581 = vcmp.eq.s32.totalorder %v1579, 0
  %v1582 = vxor.u32 %v1576, 2147483648
  %v1583 = vsel %vm1581, %v1575, %v1582
  %vm1584 = vcmp.eq.s32.totalorder %v1579, 2
  %v1585 = vxor.u32 %v1575, 2147483648
  %v1586 = vsel %vm1584, %v1585, %v1576
  %v1587 = vsel %vm1580, %v1583, %v1586
  %v1588 = vsel %vm1577, nan, %v1587
  %v1589 = vand.u32 2147483647, %v328
  %vm1590 = vcmp.le.f32.partialorder %v1589, 0.7853982
  %vm1591 = vcmp.lt.s32.totalorder %v328, 0
  %v1592 = vand.u32 %v328, 2139095040
  %v1593 = vshrl.u32 %v1592, 23
  %v1594 = vsub.s32 %v1593, 127
  %v1595 = vand.u32 2147483647, %v328
  %v1596 = vand.u32 %v1595, 8388607
  %v1597 = vor.u32 %v1596, 8388608
  %v1598 = vsub.s32 0, %v1597
  %v1599 = vadd.s32 %v1594, 1
  %vm1600 = vcmp.gt.s32.totalorder %v1599, 0
  %v1601 = vsel %vm1600, %v1599, 0
  %v1602 = vshrl.u32 %v1601, 5
  %v1603 = vand.u32 %v1601, 31
  %v1604 = vsub.s32 32, %v1603
  %v1605 = vshrl.u32 683565275, %v1604
  %v1606 = vshll.u32 683565275, %v1603
  %v1607 = vshrl.u32 2475754826, %v1604
  %v1608 = vor.u32 %v1606, %v1607
  %v1609 = vshll.u32 2475754826, %v1603
  %v1610 = vshrl.u32 2131351028, %v1604
  %v1611 = vor.u32 %v1609, %v1610
  %v1612 = vshll.u32 2131351028, %v1603
  %v1613 = vshrl.u32 2102212464, %v1604
  %v1614 = vor.u32 %v1612, %v1613
  %v1615 = vshll.u32 2102212464, %v1603
  %v1616 = vshrl.u32 920167782, %v1604
  %v1617 = vor.u32 %v1615, %v1616
  %v1618 = vshll.u32 920167782, %v1603
  %v1619 = vshrl.u32 1326507024, %v1604
  %v1620 = vor.u32 %v1618, %v1619
  %vm1621 = vcmp.lt.s32.totalorder %v1602, 1
  %vm1622 = vcmp.lt.s32.totalorder %v1602, 2
  %vm1623 = vcmp.lt.s32.totalorder %v1602, 3
  %vm1624 = vcmp.lt.s32.totalorder %v1602, 4
  %v1625 = vsel %vm1621, %v1605, %v1608
  %v1626 = vsel %vm1624, %v1614, 2102212464
  %v1627 = vsel %vm1623, %v1611, %v1626
  %v1628 = vsel %vm1622, %v1625, %v1627
  %v1629 = vsel %vm1621, %v1608, %v1611
  %v1630 = vsel %vm1624, %v1617, 920167782
  %v1631 = vsel %vm1623, %v1614, %v1630
  %v1632 = vsel %vm1622, %v1629, %v1631
  %v1633 = vsel %vm1621, %v1611, %v1614
  %v1634 = vsel %vm1624, %v1620, 1326507024
  %v1635 = vsel %vm1623, %v1617, %v1634
  %v1636 = vsel %vm1622, %v1633, %v1635
  %v1637 = vshll.u32 %v1597, 8
  %v1638 = vmul.u32.u64.compose %v1637, %v1636
  %v1639 = vextract.low.u32 %v1638
  %v1640 = vextract.high.u32 %v1638
  %v1641 = vmul.u32.u64.compose %v1637, %v1632
  %v1642 = vextract.low.u32 %v1641
  %v1643 = vextract.high.u32 %v1641
  %v1644 = vmul.u32 %v1637, %v1628
  %v1645 = vadd.s32 %v1640, %v1642
  %vm1646 = vc.u32 %v1640, %v1642
  %v1647 = vadd.s32 %v1643, 1
  %v1648 = vsel %vm1646, %v1647, %v1643
  %v1649 = vadd.s32 %v1644, %v1648
  %v1650 = vadd.s32 %v1649, 536870912
  %v1651 = vshrl.u32 %v1650, 30
  %v1652 = vshll.u32 %v1651, 30
  %v1653 = vsub.s32 %v1649, %v1652
  %vm1654 = vcmp.lt.s32.totalorder %v1653, 0
  %v1655 = vsub.s32 0, %v1653
  %v1656 = vsel %vm1654, %v1655, %v1653
  %v1657 = vclz %v1656
  %v1658 = vsub.s32 %v1657, 2
  %vm1659 = vcmp.gt.s32.totalorder 0, %v1658
  %v1660 = vsel %vm1659, 0, %v1658
  %v1661 = vsub.s32 32, %v1660
  %v1662 = vshll.u32 %v1653, %v1660
  %v1663 = vshrl.u32 %v1645, %v1661
  %v1664 = vor.u32 %v1662, %v1663
  %v1665 = vsub.s32 4294967266, %v1660
  %v1666 = vadd.s32 %v1665, 127
  %v1667 = vshll.u32 %v1666, 23
  %v1668 = vor.u32 4788187, %v1667
  %v1669 = vand.u32 2147483647, %v1668
  %v1671 = vcvt.s32.f32 %v1664
  %v1672 = vmul.f32 %v1671, %v1669
  %v1673 = vxor.u32 %v1672, 2147483648
  %v1674 = vsel %vm1591, %v1673, %v1672
  %v1675 = vsub.s32 4, %v1651
  %v1676 = vsel %vm1591, %v1675, %v1651
  %v1677 = vsel %vm1590, %v328, %v1674
  %v1678 = vsel %vm1590, 0, %v1676
  %v1679 = vcosq.f32.pop %v1677
  %v1680 = vsinq.f32.pop %v1677
  %vm1681 = vweird.f32 %v328
  %v1682 = vadd.s32 %v1678, 3
  %v1683 = vand.u32 %v1682, 3
  %vm1684 = vcmp.lt.s32.totalorder %v1683, 2
  %vm1685 = vcmp.eq.s32.totalorder %v1683, 0
  %v1686 = vxor.u32 %v1680, 2147483648
  %v1687 = vsel %vm1685, %v1679, %v1686
  %vm1688 = vcmp.eq.s32.totalorder %v1683, 2
  %v1689 = vxor.u32 %v1679, 2147483648
  %v1690 = vsel %vm1688, %v1689, %v1680
  %v1691 = vsel %vm1684, %v1687, %v1690
  %v1692 = vsel %vm1681, nan, %v1691
  %v1693 = vand.u32 2147483647, %v329
  %vm1694 = vcmp.le.f32.partialorder %v1693, 0.7853982
  %vm1695 = vcmp.lt.s32.totalorder %v329, 0
  %v1696 = vand.u32 %v329, 2139095040
  %v1697 = vshrl.u32 %v1696, 23
  %v1698 = vsub.s32 %v1697, 127
  %v1699 = vand.u32 2147483647, %v329
  %v1700 = vand.u32 %v1699, 8388607
  %v1701 = vor.u32 %v1700, 8388608
  %v1702 = vsub.s32 0, %v1701
  %v1703 = vadd.s32 %v1698, 1
  %vm1704 = vcmp.gt.s32.totalorder %v1703, 0
  %v1705 = vsel %vm1704, %v1703, 0
  %v1706 = vshrl.u32 %v1705, 5
  %v1707 = vand.u32 %v1705, 31
  %v1708 = vsub.s32 32, %v1707
  %v1709 = vshrl.u32 683565275, %v1708
  %v1710 = vshll.u32 683565275, %v1707
  %v1711 = vshrl.u32 2475754826, %v1708
  %v1712 = vor.u32 %v1710, %v1711
  %v1713 = vshll.u32 2475754826, %v1707
  %v1714 = vshrl.u32 2131351028, %v1708
  %v1715 = vor.u32 %v1713, %v1714
  %v1716 = vshll.u32 2131351028, %v1707
  %v1717 = vshrl.u32 2102212464, %v1708
  %v1718 = vor.u32 %v1716, %v1717
  %v1719 = vshll.u32 2102212464, %v1707
  %v1720 = vshrl.u32 920167782, %v1708
  %v1721 = vor.u32 %v1719, %v1720
  %v1722 = vshll.u32 920167782, %v1707
  %v1723 = vshrl.u32 1326507024, %v1708
  %v1724 = vor.u32 %v1722, %v1723
  %vm1725 = vcmp.lt.s32.totalorder %v1706, 1
  %vm1726 = vcmp.lt.s32.totalorder %v1706, 2
  %vm1727 = vcmp.lt.s32.totalorder %v1706, 3
  %vm1728 = vcmp.lt.s32.totalorder %v1706, 4
  %v1729 = vsel %vm1725, %v1709, %v1712
  %v1730 = vsel %vm1728, %v1718, 2102212464
  %v1731 = vsel %vm1727, %v1715, %v1730
  %v1732 = vsel %vm1726, %v1729, %v1731
  %v1733 = vsel %vm1725, %v1712, %v1715
  %v1734 = vsel %vm1728, %v1721, 920167782
  %v1735 = vsel %vm1727, %v1718, %v1734
  %v1736 = vsel %vm1726, %v1733, %v1735
  %v1737 = vsel %vm1725, %v1715, %v1718
  %v1738 = vsel %vm1728, %v1724, 1326507024
  %v1739 = vsel %vm1727, %v1721, %v1738
  %v1740 = vsel %vm1726, %v1737, %v1739
  %v1741 = vshll.u32 %v1701, 8
  %v1742 = vmul.u32.u64.compose %v1741, %v1740
  %v1743 = vextract.low.u32 %v1742
  %v1744 = vextract.high.u32 %v1742
  %v1745 = vmul.u32.u64.compose %v1741, %v1736
  %v1746 = vextract.low.u32 %v1745
  %v1747 = vextract.high.u32 %v1745
  %v1748 = vmul.u32 %v1741, %v1732
  %v1749 = vadd.s32 %v1744, %v1746
  %vm1750 = vc.u32 %v1744, %v1746
  %v1751 = vadd.s32 %v1747, 1
  %v1752 = vsel %vm1750, %v1751, %v1747
  %v1753 = vadd.s32 %v1748, %v1752
  %v1754 = vadd.s32 %v1753, 536870912
  %v1755 = vshrl.u32 %v1754, 30
  %v1756 = vshll.u32 %v1755, 30
  %v1757 = vsub.s32 %v1753, %v1756
  %vm1758 = vcmp.lt.s32.totalorder %v1757, 0
  %v1759 = vsub.s32 0, %v1757
  %v1760 = vsel %vm1758, %v1759, %v1757
  %v1761 = vclz %v1760
  %v1762 = vsub.s32 %v1761, 2
  %vm1763 = vcmp.gt.s32.totalorder 0, %v1762
  %v1764 = vsel %vm1763, 0, %v1762
  %v1765 = vsub.s32 32, %v1764
  %v1766 = vshll.u32 %v1757, %v1764
  %v1767 = vshrl.u32 %v1749, %v1765
  %v1768 = vor.u32 %v1766, %v1767
  %v1769 = vsub.s32 4294967266, %v1764
  %v1770 = vadd.s32 %v1769, 127
  %v1771 = vshll.u32 %v1770, 23
  %v1772 = vor.u32 4788187, %v1771
  %v1773 = vand.u32 2147483647, %v1772
  %v1775 = vcvt.s32.f32 %v1768
  %v1776 = vmul.f32 %v1775, %v1773
  %v1777 = vxor.u32 %v1776, 2147483648
  %v1778 = vsel %vm1695, %v1777, %v1776
  %v1779 = vsub.s32 4, %v1755
  %v1780 = vsel %vm1695, %v1779, %v1755
  %v1781 = vsel %vm1694, %v329, %v1778
  %v1782 = vsel %vm1694, 0, %v1780
  %v1783 = vcosq.f32.pop %v1781
  %v1784 = vsinq.f32.pop %v1781
  %vm1785 = vweird.f32 %v329
  %v1786 = vadd.s32 %v1782, 3
  %v1787 = vand.u32 %v1786, 3
  %vm1788 = vcmp.lt.s32.totalorder %v1787, 2
  %vm1789 = vcmp.eq.s32.totalorder %v1787, 0
  %v1790 = vxor.u32 %v1784, 2147483648
  %v1791 = vsel %vm1789, %v1783, %v1790
  %vm1792 = vcmp.eq.s32.totalorder %v1787, 2
  %v1793 = vxor.u32 %v1783, 2147483648
  %v1794 = vsel %vm1792, %v1793, %v1784
  %v1795 = vsel %vm1788, %v1791, %v1794
  %v1796 = vsel %vm1785, nan, %v1795
  %v1797 = vand.u32 2147483647, %v330
  %vm1798 = vcmp.le.f32.partialorder %v1797, 0.7853982
  %vm1799 = vcmp.lt.s32.totalorder %v330, 0
  %v1800 = vand.u32 %v330, 2139095040
  %v1801 = vshrl.u32 %v1800, 23
  %v1802 = vsub.s32 %v1801, 127
  %v1803 = vand.u32 2147483647, %v330
  %v1804 = vand.u32 %v1803, 8388607
  %v1805 = vor.u32 %v1804, 8388608
  %v1806 = vsub.s32 0, %v1805
  %v1807 = vadd.s32 %v1802, 1
  %vm1808 = vcmp.gt.s32.totalorder %v1807, 0
  %v1809 = vsel %vm1808, %v1807, 0
  %v1810 = vshrl.u32 %v1809, 5
  %v1811 = vand.u32 %v1809, 31
  %v1812 = vsub.s32 32, %v1811
  %v1813 = vshrl.u32 683565275, %v1812
  %v1814 = vshll.u32 683565275, %v1811
  %v1815 = vshrl.u32 2475754826, %v1812
  %v1816 = vor.u32 %v1814, %v1815
  %v1817 = vshll.u32 2475754826, %v1811
  %v1818 = vshrl.u32 2131351028, %v1812
  %v1819 = vor.u32 %v1817, %v1818
  %v1820 = vshll.u32 2131351028, %v1811
  %v1821 = vshrl.u32 2102212464, %v1812
  %v1822 = vor.u32 %v1820, %v1821
  %v1823 = vshll.u32 2102212464, %v1811
  %v1824 = vshrl.u32 920167782, %v1812
  %v1825 = vor.u32 %v1823, %v1824
  %v1826 = vshll.u32 920167782, %v1811
  %v1827 = vshrl.u32 1326507024, %v1812
  %v1828 = vor.u32 %v1826, %v1827
  %vm1829 = vcmp.lt.s32.totalorder %v1810, 1
  %vm1830 = vcmp.lt.s32.totalorder %v1810, 2
  %vm1831 = vcmp.lt.s32.totalorder %v1810, 3
  %vm1832 = vcmp.lt.s32.totalorder %v1810, 4
  %v1833 = vsel %vm1829, %v1813, %v1816
  %v1834 = vsel %vm1832, %v1822, 2102212464
  %v1835 = vsel %vm1831, %v1819, %v1834
  %v1836 = vsel %vm1830, %v1833, %v1835
  %v1837 = vsel %vm1829, %v1816, %v1819
  %v1838 = vsel %vm1832, %v1825, 920167782
  %v1839 = vsel %vm1831, %v1822, %v1838
  %v1840 = vsel %vm1830, %v1837, %v1839
  %v1841 = vsel %vm1829, %v1819, %v1822
  %v1842 = vsel %vm1832, %v1828, 1326507024
  %v1843 = vsel %vm1831, %v1825, %v1842
  %v1844 = vsel %vm1830, %v1841, %v1843
  %v1845 = vshll.u32 %v1805, 8
  %v1846 = vmul.u32.u64.compose %v1845, %v1844
  %v1847 = vextract.low.u32 %v1846
  %v1848 = vextract.high.u32 %v1846
  %v1849 = vmul.u32.u64.compose %v1845, %v1840
  %v1850 = vextract.low.u32 %v1849
  %v1851 = vextract.high.u32 %v1849
  %v1852 = vmul.u32 %v1845, %v1836
  %v1853 = vadd.s32 %v1848, %v1850
  %vm1854 = vc.u32 %v1848, %v1850
  %v1855 = vadd.s32 %v1851, 1
  %v1856 = vsel %vm1854, %v1855, %v1851
  %v1857 = vadd.s32 %v1852, %v1856
  %v1858 = vadd.s32 %v1857, 536870912
  %v1859 = vshrl.u32 %v1858, 30
  %v1860 = vshll.u32 %v1859, 30
  %v1861 = vsub.s32 %v1857, %v1860
  %vm1862 = vcmp.lt.s32.totalorder %v1861, 0
  %v1863 = vsub.s32 0, %v1861
  %v1864 = vsel %vm1862, %v1863, %v1861
  %v1865 = vclz %v1864
  %v1866 = vsub.s32 %v1865, 2
  %vm1867 = vcmp.gt.s32.totalorder 0, %v1866
  %v1868 = vsel %vm1867, 0, %v1866
  %v1869 = vsub.s32 32, %v1868
  %v1870 = vshll.u32 %v1861, %v1868
  %v1871 = vshrl.u32 %v1853, %v1869
  %v1872 = vor.u32 %v1870, %v1871
  %v1873 = vsub.s32 4294967266, %v1868
  %v1874 = vadd.s32 %v1873, 127
  %v1875 = vshll.u32 %v1874, 23
  %v1876 = vor.u32 4788187, %v1875
  %v1877 = vand.u32 2147483647, %v1876
  %v1879 = vcvt.s32.f32 %v1872
  %v1880 = vmul.f32 %v1879, %v1877
  %v1881 = vxor.u32 %v1880, 2147483648
  %v1882 = vsel %vm1799, %v1881, %v1880
  %v1883 = vsub.s32 4, %v1859
  %v1884 = vsel %vm1799, %v1883, %v1859
  %v1885 = vsel %vm1798, %v330, %v1882
  %v1886 = vsel %vm1798, 0, %v1884
  %v1887 = vcosq.f32.pop %v1885
  %v1888 = vsinq.f32.pop %v1885
  %vm1889 = vweird.f32 %v330
  %v1890 = vadd.s32 %v1886, 3
  %v1891 = vand.u32 %v1890, 3
  %vm1892 = vcmp.lt.s32.totalorder %v1891, 2
  %vm1893 = vcmp.eq.s32.totalorder %v1891, 0
  %v1894 = vxor.u32 %v1888, 2147483648
  %v1895 = vsel %vm1893, %v1887, %v1894
  %vm1896 = vcmp.eq.s32.totalorder %v1891, 2
  %v1897 = vxor.u32 %v1887, 2147483648
  %v1898 = vsel %vm1896, %v1897, %v1888
  %v1899 = vsel %vm1892, %v1895, %v1898
  %v1900 = vsel %vm1889, nan, %v1899
  %v1901 = vand.u32 2147483647, %v331
  %vm1902 = vcmp.le.f32.partialorder %v1901, 0.7853982
  %vm1903 = vcmp.lt.s32.totalorder %v331, 0
  %v1904 = vand.u32 %v331, 2139095040
  %v1905 = vshrl.u32 %v1904, 23
  %v1906 = vsub.s32 %v1905, 127
  %v1907 = vand.u32 2147483647, %v331
  %v1908 = vand.u32 %v1907, 8388607
  %v1909 = vor.u32 %v1908, 8388608
  %v1910 = vsub.s32 0, %v1909
  %v1911 = vadd.s32 %v1906, 1
  %vm1912 = vcmp.gt.s32.totalorder %v1911, 0
  %v1913 = vsel %vm1912, %v1911, 0
  %v1914 = vshrl.u32 %v1913, 5
  %v1915 = vand.u32 %v1913, 31
  %v1916 = vsub.s32 32, %v1915
  %v1917 = vshrl.u32 683565275, %v1916
  %v1918 = vshll.u32 683565275, %v1915
  %v1919 = vshrl.u32 2475754826, %v1916
  %v1920 = vor.u32 %v1918, %v1919
  %v1921 = vshll.u32 2475754826, %v1915
  %v1922 = vshrl.u32 2131351028, %v1916
  %v1923 = vor.u32 %v1921, %v1922
  %v1924 = vshll.u32 2131351028, %v1915
  %v1925 = vshrl.u32 2102212464, %v1916
  %v1926 = vor.u32 %v1924, %v1925
  %v1927 = vshll.u32 2102212464, %v1915
  %v1928 = vshrl.u32 920167782, %v1916
  %v1929 = vor.u32 %v1927, %v1928
  %v1930 = vshll.u32 920167782, %v1915
  %v1931 = vshrl.u32 1326507024, %v1916
  %v1932 = vor.u32 %v1930, %v1931
  %vm1933 = vcmp.lt.s32.totalorder %v1914, 1
  %vm1934 = vcmp.lt.s32.totalorder %v1914, 2
  %vm1935 = vcmp.lt.s32.totalorder %v1914, 3
  %vm1936 = vcmp.lt.s32.totalorder %v1914, 4
  %v1937 = vsel %vm1933, %v1917, %v1920
  %v1938 = vsel %vm1936, %v1926, 2102212464
  %v1939 = vsel %vm1935, %v1923, %v1938
  %v1940 = vsel %vm1934, %v1937, %v1939
  %v1941 = vsel %vm1933, %v1920, %v1923
  %v1942 = vsel %vm1936, %v1929, 920167782
  %v1943 = vsel %vm1935, %v1926, %v1942
  %v1944 = vsel %vm1934, %v1941, %v1943
  %v1945 = vsel %vm1933, %v1923, %v1926
  %v1946 = vsel %vm1936, %v1932, 1326507024
  %v1947 = vsel %vm1935, %v1929, %v1946
  %v1948 = vsel %vm1934, %v1945, %v1947
  %v1949 = vshll.u32 %v1909, 8
  %v1950 = vmul.u32.u64.compose %v1949, %v1948
  %v1951 = vextract.low.u32 %v1950
  %v1952 = vextract.high.u32 %v1950
  %v1953 = vmul.u32.u64.compose %v1949, %v1944
  %v1954 = vextract.low.u32 %v1953
  %v1955 = vextract.high.u32 %v1953
  %v1956 = vmul.u32 %v1949, %v1940
  %v1957 = vadd.s32 %v1952, %v1954
  %vm1958 = vc.u32 %v1952, %v1954
  %v1959 = vadd.s32 %v1955, 1
  %v1960 = vsel %vm1958, %v1959, %v1955
  %v1961 = vadd.s32 %v1956, %v1960
  %v1962 = vadd.s32 %v1961, 536870912
  %v1963 = vshrl.u32 %v1962, 30
  %v1964 = vshll.u32 %v1963, 30
  %v1965 = vsub.s32 %v1961, %v1964
  %vm1966 = vcmp.lt.s32.totalorder %v1965, 0
  %v1967 = vsub.s32 0, %v1965
  %v1968 = vsel %vm1966, %v1967, %v1965
  %v1969 = vclz %v1968
  %v1970 = vsub.s32 %v1969, 2
  %vm1971 = vcmp.gt.s32.totalorder 0, %v1970
  %v1972 = vsel %vm1971, 0, %v1970
  %v1973 = vsub.s32 32, %v1972
  %v1974 = vshll.u32 %v1965, %v1972
  %v1975 = vshrl.u32 %v1957, %v1973
  %v1976 = vor.u32 %v1974, %v1975
  %v1977 = vsub.s32 4294967266, %v1972
  %v1978 = vadd.s32 %v1977, 127
  %v1979 = vshll.u32 %v1978, 23
  %v1980 = vor.u32 4788187, %v1979
  %v1981 = vand.u32 2147483647, %v1980
  %v1983 = vcvt.s32.f32 %v1976
  %v1984 = vmul.f32 %v1983, %v1981
  %v1985 = vxor.u32 %v1984, 2147483648
  %v1986 = vsel %vm1903, %v1985, %v1984
  %v1987 = vsub.s32 4, %v1963
  %v1988 = vsel %vm1903, %v1987, %v1963
  %v1989 = vsel %vm1902, %v331, %v1986
  %v1990 = vsel %vm1902, 0, %v1988
  %v1991 = vcosq.f32.pop %v1989
  %v1992 = vsinq.f32.pop %v1989
  %vm1993 = vweird.f32 %v331
  %v1994 = vadd.s32 %v1990, 3
  %v1995 = vand.u32 %v1994, 3
  %vm1996 = vcmp.lt.s32.totalorder %v1995, 2
  %vm1997 = vcmp.eq.s32.totalorder %v1995, 0
  %v1998 = vxor.u32 %v1992, 2147483648
  %v1999 = vsel %vm1997, %v1991, %v1998
  %vm2000 = vcmp.eq.s32.totalorder %v1995, 2
  %v2001 = vxor.u32 %v1991, 2147483648
  %v2002 = vsel %vm2000, %v2001, %v1992
  %v2003 = vsel %vm1996, %v1999, %v2002
  %v2004 = vsel %vm1993, nan, %v2003
  %v2005 = vand.u32 2147483647, %v332
  %vm2006 = vcmp.le.f32.partialorder %v2005, 0.7853982
  %vm2007 = vcmp.lt.s32.totalorder %v332, 0
  %v2008 = vand.u32 %v332, 2139095040
  %v2009 = vshrl.u32 %v2008, 23
  %v2010 = vsub.s32 %v2009, 127
  %v2011 = vand.u32 2147483647, %v332
  %v2012 = vand.u32 %v2011, 8388607
  %v2013 = vor.u32 %v2012, 8388608
  %v2014 = vsub.s32 0, %v2013
  %v2015 = vadd.s32 %v2010, 1
  %vm2016 = vcmp.gt.s32.totalorder %v2015, 0
  %v2017 = vsel %vm2016, %v2015, 0
  %v2018 = vshrl.u32 %v2017, 5
  %v2019 = vand.u32 %v2017, 31
  %v2020 = vsub.s32 32, %v2019
  %v2021 = vshrl.u32 683565275, %v2020
  %v2022 = vshll.u32 683565275, %v2019
  %v2023 = vshrl.u32 2475754826, %v2020
  %v2024 = vor.u32 %v2022, %v2023
  %v2025 = vshll.u32 2475754826, %v2019
  %v2026 = vshrl.u32 2131351028, %v2020
  %v2027 = vor.u32 %v2025, %v2026
  %v2028 = vshll.u32 2131351028, %v2019
  %v2029 = vshrl.u32 2102212464, %v2020
  %v2030 = vor.u32 %v2028, %v2029
  %v2031 = vshll.u32 2102212464, %v2019
  %v2032 = vshrl.u32 920167782, %v2020
  %v2033 = vor.u32 %v2031, %v2032
  %v2034 = vshll.u32 920167782, %v2019
  %v2035 = vshrl.u32 1326507024, %v2020
  %v2036 = vor.u32 %v2034, %v2035
  %vm2037 = vcmp.lt.s32.totalorder %v2018, 1
  %vm2038 = vcmp.lt.s32.totalorder %v2018, 2
  %vm2039 = vcmp.lt.s32.totalorder %v2018, 3
  %vm2040 = vcmp.lt.s32.totalorder %v2018, 4
  %v2041 = vsel %vm2037, %v2021, %v2024
  %v2042 = vsel %vm2040, %v2030, 2102212464
  %v2043 = vsel %vm2039, %v2027, %v2042
  %v2044 = vsel %vm2038, %v2041, %v2043
  %v2045 = vsel %vm2037, %v2024, %v2027
  %v2046 = vsel %vm2040, %v2033, 920167782
  %v2047 = vsel %vm2039, %v2030, %v2046
  %v2048 = vsel %vm2038, %v2045, %v2047
  %v2049 = vsel %vm2037, %v2027, %v2030
  %v2050 = vsel %vm2040, %v2036, 1326507024
  %v2051 = vsel %vm2039, %v2033, %v2050
  %v2052 = vsel %vm2038, %v2049, %v2051
  %v2053 = vshll.u32 %v2013, 8
  %v2054 = vmul.u32.u64.compose %v2053, %v2052
  %v2055 = vextract.low.u32 %v2054
  %v2056 = vextract.high.u32 %v2054
  %v2057 = vmul.u32.u64.compose %v2053, %v2048
  %v2058 = vextract.low.u32 %v2057
  %v2059 = vextract.high.u32 %v2057
  %v2060 = vmul.u32 %v2053, %v2044
  %v2061 = vadd.s32 %v2056, %v2058
  %vm2062 = vc.u32 %v2056, %v2058
  %v2063 = vadd.s32 %v2059, 1
  %v2064 = vsel %vm2062, %v2063, %v2059
  %v2065 = vadd.s32 %v2060, %v2064
  %v2066 = vadd.s32 %v2065, 536870912
  %v2067 = vshrl.u32 %v2066, 30
  %v2068 = vshll.u32 %v2067, 30
  %v2069 = vsub.s32 %v2065, %v2068
  %vm2070 = vcmp.lt.s32.totalorder %v2069, 0
  %v2071 = vsub.s32 0, %v2069
  %v2072 = vsel %vm2070, %v2071, %v2069
  %v2073 = vclz %v2072
  %v2074 = vsub.s32 %v2073, 2
  %vm2075 = vcmp.gt.s32.totalorder 0, %v2074
  %v2076 = vsel %vm2075, 0, %v2074
  %v2077 = vsub.s32 32, %v2076
  %v2078 = vshll.u32 %v2069, %v2076
  %v2079 = vshrl.u32 %v2061, %v2077
  %v2080 = vor.u32 %v2078, %v2079
  %v2081 = vsub.s32 4294967266, %v2076
  %v2082 = vadd.s32 %v2081, 127
  %v2083 = vshll.u32 %v2082, 23
  %v2084 = vor.u32 4788187, %v2083
  %v2085 = vand.u32 2147483647, %v2084
  %v2087 = vcvt.s32.f32 %v2080
  %v2088 = vmul.f32 %v2087, %v2085
  %v2089 = vxor.u32 %v2088, 2147483648
  %v2090 = vsel %vm2007, %v2089, %v2088
  %v2091 = vsub.s32 4, %v2067
  %v2092 = vsel %vm2007, %v2091, %v2067
  %v2093 = vsel %vm2006, %v332, %v2090
  %v2094 = vsel %vm2006, 0, %v2092
  %v2095 = vcosq.f32.pop %v2093
  %v2096 = vsinq.f32.pop %v2093
  %vm2097 = vweird.f32 %v332
  %v2098 = vadd.s32 %v2094, 3
  %v2099 = vand.u32 %v2098, 3
  %vm2100 = vcmp.lt.s32.totalorder %v2099, 2
  %vm2101 = vcmp.eq.s32.totalorder %v2099, 0
  %v2102 = vxor.u32 %v2096, 2147483648
  %v2103 = vsel %vm2101, %v2095, %v2102
  %vm2104 = vcmp.eq.s32.totalorder %v2099, 2
  %v2105 = vxor.u32 %v2095, 2147483648
  %v2106 = vsel %vm2104, %v2105, %v2096
  %v2107 = vsel %vm2100, %v2103, %v2106
  %v2108 = vsel %vm2097, nan, %v2107
  %v2109 = vand.u32 2147483647, %v333
  %vm2110 = vcmp.le.f32.partialorder %v2109, 0.7853982
  %vm2111 = vcmp.lt.s32.totalorder %v333, 0
  %v2112 = vand.u32 %v333, 2139095040
  %v2113 = vshrl.u32 %v2112, 23
  %v2114 = vsub.s32 %v2113, 127
  %v2115 = vand.u32 2147483647, %v333
  %v2116 = vand.u32 %v2115, 8388607
  %v2117 = vor.u32 %v2116, 8388608
  %v2118 = vsub.s32 0, %v2117
  %v2119 = vadd.s32 %v2114, 1
  %vm2120 = vcmp.gt.s32.totalorder %v2119, 0
  %v2121 = vsel %vm2120, %v2119, 0
  %v2122 = vshrl.u32 %v2121, 5
  %v2123 = vand.u32 %v2121, 31
  %v2124 = vsub.s32 32, %v2123
  %v2125 = vshrl.u32 683565275, %v2124
  %v2126 = vshll.u32 683565275, %v2123
  %v2127 = vshrl.u32 2475754826, %v2124
  %v2128 = vor.u32 %v2126, %v2127
  %v2129 = vshll.u32 2475754826, %v2123
  %v2130 = vshrl.u32 2131351028, %v2124
  %v2131 = vor.u32 %v2129, %v2130
  %v2132 = vshll.u32 2131351028, %v2123
  %v2133 = vshrl.u32 2102212464, %v2124
  %v2134 = vor.u32 %v2132, %v2133
  %v2135 = vshll.u32 2102212464, %v2123
  %v2136 = vshrl.u32 920167782, %v2124
  %v2137 = vor.u32 %v2135, %v2136
  %v2138 = vshll.u32 920167782, %v2123
  %v2139 = vshrl.u32 1326507024, %v2124
  %v2140 = vor.u32 %v2138, %v2139
  %vm2141 = vcmp.lt.s32.totalorder %v2122, 1
  %vm2142 = vcmp.lt.s32.totalorder %v2122, 2
  %vm2143 = vcmp.lt.s32.totalorder %v2122, 3
  %vm2144 = vcmp.lt.s32.totalorder %v2122, 4
  %v2145 = vsel %vm2141, %v2125, %v2128
  %v2146 = vsel %vm2144, %v2134, 2102212464
  %v2147 = vsel %vm2143, %v2131, %v2146
  %v2148 = vsel %vm2142, %v2145, %v2147
  %v2149 = vsel %vm2141, %v2128, %v2131
  %v2150 = vsel %vm2144, %v2137, 920167782
  %v2151 = vsel %vm2143, %v2134, %v2150
  %v2152 = vsel %vm2142, %v2149, %v2151
  %v2153 = vsel %vm2141, %v2131, %v2134
  %v2154 = vsel %vm2144, %v2140, 1326507024
  %v2155 = vsel %vm2143, %v2137, %v2154
  %v2156 = vsel %vm2142, %v2153, %v2155
  %v2157 = vshll.u32 %v2117, 8
  %v2158 = vmul.u32.u64.compose %v2157, %v2156
  %v2159 = vextract.low.u32 %v2158
  %v2160 = vextract.high.u32 %v2158
  %v2161 = vmul.u32.u64.compose %v2157, %v2152
  %v2162 = vextract.low.u32 %v2161
  %v2163 = vextract.high.u32 %v2161
  %v2164 = vmul.u32 %v2157, %v2148
  %v2165 = vadd.s32 %v2160, %v2162
  %vm2166 = vc.u32 %v2160, %v2162
  %v2167 = vadd.s32 %v2163, 1
  %v2168 = vsel %vm2166, %v2167, %v2163
  %v2169 = vadd.s32 %v2164, %v2168
  %v2170 = vadd.s32 %v2169, 536870912
  %v2171 = vshrl.u32 %v2170, 30
  %v2172 = vshll.u32 %v2171, 30
  %v2173 = vsub.s32 %v2169, %v2172
  %vm2174 = vcmp.lt.s32.totalorder %v2173, 0
  %v2175 = vsub.s32 0, %v2173
  %v2176 = vsel %vm2174, %v2175, %v2173
  %v2177 = vclz %v2176
  %v2178 = vsub.s32 %v2177, 2
  %vm2179 = vcmp.gt.s32.totalorder 0, %v2178
  %v2180 = vsel %vm2179, 0, %v2178
  %v2181 = vsub.s32 32, %v2180
  %v2182 = vshll.u32 %v2173, %v2180
  %v2183 = vshrl.u32 %v2165, %v2181
  %v2184 = vor.u32 %v2182, %v2183
  %v2185 = vsub.s32 4294967266, %v2180
  %v2186 = vadd.s32 %v2185, 127
  %v2187 = vshll.u32 %v2186, 23
  %v2188 = vor.u32 4788187, %v2187
  %v2189 = vand.u32 2147483647, %v2188
  %v2191 = vcvt.s32.f32 %v2184
  %v2192 = vmul.f32 %v2191, %v2189
  %v2193 = vxor.u32 %v2192, 2147483648
  %v2194 = vsel %vm2111, %v2193, %v2192
  %v2195 = vsub.s32 4, %v2171
  %v2196 = vsel %vm2111, %v2195, %v2171
  %v2197 = vsel %vm2110, %v333, %v2194
  %v2198 = vsel %vm2110, 0, %v2196
  %v2199 = vcosq.f32.pop %v2197
  %v2200 = vsinq.f32.pop %v2197
  %vm2201 = vweird.f32 %v333
  %v2202 = vadd.s32 %v2198, 3
  %v2203 = vand.u32 %v2202, 3
  %vm2204 = vcmp.lt.s32.totalorder %v2203, 2
  %vm2205 = vcmp.eq.s32.totalorder %v2203, 0
  %v2206 = vxor.u32 %v2200, 2147483648
  %v2207 = vsel %vm2205, %v2199, %v2206
  %vm2208 = vcmp.eq.s32.totalorder %v2203, 2
  %v2209 = vxor.u32 %v2199, 2147483648
  %v2210 = vsel %vm2208, %v2209, %v2200
  %v2211 = vsel %vm2204, %v2207, %v2210
  %v2212 = vsel %vm2201, nan, %v2211
  %v2213 = vand.u32 2147483647, %v334
  %vm2214 = vcmp.le.f32.partialorder %v2213, 0.7853982
  %vm2215 = vcmp.lt.s32.totalorder %v334, 0
  %v2216 = vand.u32 %v334, 2139095040
  %v2217 = vshrl.u32 %v2216, 23
  %v2218 = vsub.s32 %v2217, 127
  %v2219 = vand.u32 2147483647, %v334
  %v2220 = vand.u32 %v2219, 8388607
  %v2221 = vor.u32 %v2220, 8388608
  %v2222 = vsub.s32 0, %v2221
  %v2223 = vadd.s32 %v2218, 1
  %vm2224 = vcmp.gt.s32.totalorder %v2223, 0
  %v2225 = vsel %vm2224, %v2223, 0
  %v2226 = vshrl.u32 %v2225, 5
  %v2227 = vand.u32 %v2225, 31
  %v2228 = vsub.s32 32, %v2227
  %v2229 = vshrl.u32 683565275, %v2228
  %v2230 = vshll.u32 683565275, %v2227
  %v2231 = vshrl.u32 2475754826, %v2228
  %v2232 = vor.u32 %v2230, %v2231
  %v2233 = vshll.u32 2475754826, %v2227
  %v2234 = vshrl.u32 2131351028, %v2228
  %v2235 = vor.u32 %v2233, %v2234
  %v2236 = vshll.u32 2131351028, %v2227
  %v2237 = vshrl.u32 2102212464, %v2228
  %v2238 = vor.u32 %v2236, %v2237
  %v2239 = vshll.u32 2102212464, %v2227
  %v2240 = vshrl.u32 920167782, %v2228
  %v2241 = vor.u32 %v2239, %v2240
  %v2242 = vshll.u32 920167782, %v2227
  %v2243 = vshrl.u32 1326507024, %v2228
  %v2244 = vor.u32 %v2242, %v2243
  %vm2245 = vcmp.lt.s32.totalorder %v2226, 1
  %vm2246 = vcmp.lt.s32.totalorder %v2226, 2
  %vm2247 = vcmp.lt.s32.totalorder %v2226, 3
  %vm2248 = vcmp.lt.s32.totalorder %v2226, 4
  %v2249 = vsel %vm2245, %v2229, %v2232
  %v2250 = vsel %vm2248, %v2238, 2102212464
  %v2251 = vsel %vm2247, %v2235, %v2250
  %v2252 = vsel %vm2246, %v2249, %v2251
  %v2253 = vsel %vm2245, %v2232, %v2235
  %v2254 = vsel %vm2248, %v2241, 920167782
  %v2255 = vsel %vm2247, %v2238, %v2254
  %v2256 = vsel %vm2246, %v2253, %v2255
  %v2257 = vsel %vm2245, %v2235, %v2238
  %v2258 = vsel %vm2248, %v2244, 1326507024
  %v2259 = vsel %vm2247, %v2241, %v2258
  %v2260 = vsel %vm2246, %v2257, %v2259
  %v2261 = vshll.u32 %v2221, 8
  %v2262 = vmul.u32.u64.compose %v2261, %v2260
  %v2263 = vextract.low.u32 %v2262
  %v2264 = vextract.high.u32 %v2262
  %v2265 = vmul.u32.u64.compose %v2261, %v2256
  %v2266 = vextract.low.u32 %v2265
  %v2267 = vextract.high.u32 %v2265
  %v2268 = vmul.u32 %v2261, %v2252
  %v2269 = vadd.s32 %v2264, %v2266
  %vm2270 = vc.u32 %v2264, %v2266
  %v2271 = vadd.s32 %v2267, 1
  %v2272 = vsel %vm2270, %v2271, %v2267
  %v2273 = vadd.s32 %v2268, %v2272
  %v2274 = vadd.s32 %v2273, 536870912
  %v2275 = vshrl.u32 %v2274, 30
  %v2276 = vshll.u32 %v2275, 30
  %v2277 = vsub.s32 %v2273, %v2276
  %vm2278 = vcmp.lt.s32.totalorder %v2277, 0
  %v2279 = vsub.s32 0, %v2277
  %v2280 = vsel %vm2278, %v2279, %v2277
  %v2281 = vclz %v2280
  %v2282 = vsub.s32 %v2281, 2
  %vm2283 = vcmp.gt.s32.totalorder 0, %v2282
  %v2284 = vsel %vm2283, 0, %v2282
  %v2285 = vsub.s32 32, %v2284
  %v2286 = vshll.u32 %v2277, %v2284
  %v2287 = vshrl.u32 %v2269, %v2285
  %v2288 = vor.u32 %v2286, %v2287
  %v2289 = vsub.s32 4294967266, %v2284
  %v2290 = vadd.s32 %v2289, 127
  %v2291 = vshll.u32 %v2290, 23
  %v2292 = vor.u32 4788187, %v2291
  %v2293 = vand.u32 2147483647, %v2292
  %v2295 = vcvt.s32.f32 %v2288
  %v2296 = vmul.f32 %v2295, %v2293
  %v2297 = vxor.u32 %v2296, 2147483648
  %v2298 = vsel %vm2215, %v2297, %v2296
  %v2299 = vsub.s32 4, %v2275
  %v2300 = vsel %vm2215, %v2299, %v2275
  %v2301 = vsel %vm2214, %v334, %v2298
  %v2302 = vsel %vm2214, 0, %v2300
  %v2303 = vcosq.f32.pop %v2301
  %v2304 = vsinq.f32.pop %v2301
  %vm2305 = vweird.f32 %v334
  %v2306 = vadd.s32 %v2302, 3
  %v2307 = vand.u32 %v2306, 3
  %vm2308 = vcmp.lt.s32.totalorder %v2307, 2
  %vm2309 = vcmp.eq.s32.totalorder %v2307, 0
  %v2310 = vxor.u32 %v2304, 2147483648
  %v2311 = vsel %vm2309, %v2303, %v2310
  %vm2312 = vcmp.eq.s32.totalorder %v2307, 2
  %v2313 = vxor.u32 %v2303, 2147483648
  %v2314 = vsel %vm2312, %v2313, %v2304
  %v2315 = vsel %vm2308, %v2311, %v2314
  %v2316 = vsel %vm2305, nan, %v2315
  %v2317 = vand.u32 2147483647, %v335
  %vm2318 = vcmp.le.f32.partialorder %v2317, 0.7853982
  %vm2319 = vcmp.lt.s32.totalorder %v335, 0
  %v2320 = vand.u32 %v335, 2139095040
  %v2321 = vshrl.u32 %v2320, 23
  %v2322 = vsub.s32 %v2321, 127
  %v2323 = vand.u32 2147483647, %v335
  %v2324 = vand.u32 %v2323, 8388607
  %v2325 = vor.u32 %v2324, 8388608
  %v2326 = vsub.s32 0, %v2325
  %v2327 = vadd.s32 %v2322, 1
  %vm2328 = vcmp.gt.s32.totalorder %v2327, 0
  %v2329 = vsel %vm2328, %v2327, 0
  %v2330 = vshrl.u32 %v2329, 5
  %v2331 = vand.u32 %v2329, 31
  %v2332 = vsub.s32 32, %v2331
  %v2333 = vshrl.u32 683565275, %v2332
  %v2334 = vshll.u32 683565275, %v2331
  %v2335 = vshrl.u32 2475754826, %v2332
  %v2336 = vor.u32 %v2334, %v2335
  %v2337 = vshll.u32 2475754826, %v2331
  %v2338 = vshrl.u32 2131351028, %v2332
  %v2339 = vor.u32 %v2337, %v2338
  %v2340 = vshll.u32 2131351028, %v2331
  %v2341 = vshrl.u32 2102212464, %v2332
  %v2342 = vor.u32 %v2340, %v2341
  %v2343 = vshll.u32 2102212464, %v2331
  %v2344 = vshrl.u32 920167782, %v2332
  %v2345 = vor.u32 %v2343, %v2344
  %v2346 = vshll.u32 920167782, %v2331
  %v2347 = vshrl.u32 1326507024, %v2332
  %v2348 = vor.u32 %v2346, %v2347
  %vm2349 = vcmp.lt.s32.totalorder %v2330, 1
  %vm2350 = vcmp.lt.s32.totalorder %v2330, 2
  %vm2351 = vcmp.lt.s32.totalorder %v2330, 3
  %vm2352 = vcmp.lt.s32.totalorder %v2330, 4
  %v2353 = vsel %vm2349, %v2333, %v2336
  %v2354 = vsel %vm2352, %v2342, 2102212464
  %v2355 = vsel %vm2351, %v2339, %v2354
  %v2356 = vsel %vm2350, %v2353, %v2355
  %v2357 = vsel %vm2349, %v2336, %v2339
  %v2358 = vsel %vm2352, %v2345, 920167782
  %v2359 = vsel %vm2351, %v2342, %v2358
  %v2360 = vsel %vm2350, %v2357, %v2359
  %v2361 = vsel %vm2349, %v2339, %v2342
  %v2362 = vsel %vm2352, %v2348, 1326507024
  %v2363 = vsel %vm2351, %v2345, %v2362
  %v2364 = vsel %vm2350, %v2361, %v2363
  %v2365 = vshll.u32 %v2325, 8
  %v2366 = vmul.u32.u64.compose %v2365, %v2364
  %v2367 = vextract.low.u32 %v2366
  %v2368 = vextract.high.u32 %v2366
  %v2369 = vmul.u32.u64.compose %v2365, %v2360
  %v2370 = vextract.low.u32 %v2369
  %v2371 = vextract.high.u32 %v2369
  %v2372 = vmul.u32 %v2365, %v2356
  %v2373 = vadd.s32 %v2368, %v2370
  %vm2374 = vc.u32 %v2368, %v2370
  %v2375 = vadd.s32 %v2371, 1
  %v2376 = vsel %vm2374, %v2375, %v2371
  %v2377 = vadd.s32 %v2372, %v2376
  %v2378 = vadd.s32 %v2377, 536870912
  %v2379 = vshrl.u32 %v2378, 30
  %v2380 = vshll.u32 %v2379, 30
  %v2381 = vsub.s32 %v2377, %v2380
  %vm2382 = vcmp.lt.s32.totalorder %v2381, 0
  %v2383 = vsub.s32 0, %v2381
  %v2384 = vsel %vm2382, %v2383, %v2381
  %v2385 = vclz %v2384
  %v2386 = vsub.s32 %v2385, 2
  %vm2387 = vcmp.gt.s32.totalorder 0, %v2386
  %v2388 = vsel %vm2387, 0, %v2386
  %v2389 = vsub.s32 32, %v2388
  %v2390 = vshll.u32 %v2381, %v2388
  %v2391 = vshrl.u32 %v2373, %v2389
  %v2392 = vor.u32 %v2390, %v2391
  %v2393 = vsub.s32 4294967266, %v2388
  %v2394 = vadd.s32 %v2393, 127
  %v2395 = vshll.u32 %v2394, 23
  %v2396 = vor.u32 4788187, %v2395
  %v2397 = vand.u32 2147483647, %v2396
  %v2399 = vcvt.s32.f32 %v2392
  %v2400 = vmul.f32 %v2399, %v2397
  %v2401 = vxor.u32 %v2400, 2147483648
  %v2402 = vsel %vm2319, %v2401, %v2400
  %v2403 = vsub.s32 4, %v2379
  %v2404 = vsel %vm2319, %v2403, %v2379
  %v2405 = vsel %vm2318, %v335, %v2402
  %v2406 = vsel %vm2318, 0, %v2404
  %v2407 = vcosq.f32.pop %v2405
  %v2408 = vsinq.f32.pop %v2405
  %vm2409 = vweird.f32 %v335
  %v2410 = vadd.s32 %v2406, 3
  %v2411 = vand.u32 %v2410, 3
  %vm2412 = vcmp.lt.s32.totalorder %v2411, 2
  %vm2413 = vcmp.eq.s32.totalorder %v2411, 0
  %v2414 = vxor.u32 %v2408, 2147483648
  %v2415 = vsel %vm2413, %v2407, %v2414
  %vm2416 = vcmp.eq.s32.totalorder %v2411, 2
  %v2417 = vxor.u32 %v2407, 2147483648
  %v2418 = vsel %vm2416, %v2417, %v2408
  %v2419 = vsel %vm2412, %v2415, %v2418
  %v2420 = vsel %vm2409, nan, %v2419
  %v2421 = vand.u32 2147483647, %v336
  %vm2422 = vcmp.le.f32.partialorder %v2421, 0.7853982
  %vm2423 = vcmp.lt.s32.totalorder %v336, 0
  %v2424 = vand.u32 %v336, 2139095040
  %v2425 = vshrl.u32 %v2424, 23
  %v2426 = vsub.s32 %v2425, 127
  %v2427 = vand.u32 2147483647, %v336
  %v2428 = vand.u32 %v2427, 8388607
  %v2429 = vor.u32 %v2428, 8388608
  %v2430 = vsub.s32 0, %v2429
  %v2431 = vadd.s32 %v2426, 1
  %vm2432 = vcmp.gt.s32.totalorder %v2431, 0
  %v2433 = vsel %vm2432, %v2431, 0
  %v2434 = vshrl.u32 %v2433, 5
  %v2435 = vand.u32 %v2433, 31
  %v2436 = vsub.s32 32, %v2435
  %v2437 = vshrl.u32 683565275, %v2436
  %v2438 = vshll.u32 683565275, %v2435
  %v2439 = vshrl.u32 2475754826, %v2436
  %v2440 = vor.u32 %v2438, %v2439
  %v2441 = vshll.u32 2475754826, %v2435
  %v2442 = vshrl.u32 2131351028, %v2436
  %v2443 = vor.u32 %v2441, %v2442
  %v2444 = vshll.u32 2131351028, %v2435
  %v2445 = vshrl.u32 2102212464, %v2436
  %v2446 = vor.u32 %v2444, %v2445
  %v2447 = vshll.u32 2102212464, %v2435
  %v2448 = vshrl.u32 920167782, %v2436
  %v2449 = vor.u32 %v2447, %v2448
  %v2450 = vshll.u32 920167782, %v2435
  %v2451 = vshrl.u32 1326507024, %v2436
  %v2452 = vor.u32 %v2450, %v2451
  %vm2453 = vcmp.lt.s32.totalorder %v2434, 1
  %vm2454 = vcmp.lt.s32.totalorder %v2434, 2
  %vm2455 = vcmp.lt.s32.totalorder %v2434, 3
  %vm2456 = vcmp.lt.s32.totalorder %v2434, 4
  %v2457 = vsel %vm2453, %v2437, %v2440
  %v2458 = vsel %vm2456, %v2446, 2102212464
  %v2459 = vsel %vm2455, %v2443, %v2458
  %v2460 = vsel %vm2454, %v2457, %v2459
  %v2461 = vsel %vm2453, %v2440, %v2443
  %v2462 = vsel %vm2456, %v2449, 920167782
  %v2463 = vsel %vm2455, %v2446, %v2462
  %v2464 = vsel %vm2454, %v2461, %v2463
  %v2465 = vsel %vm2453, %v2443, %v2446
  %v2466 = vsel %vm2456, %v2452, 1326507024
  %v2467 = vsel %vm2455, %v2449, %v2466
  %v2468 = vsel %vm2454, %v2465, %v2467
  %v2469 = vshll.u32 %v2429, 8
  %v2470 = vmul.u32.u64.compose %v2469, %v2468
  %v2471 = vextract.low.u32 %v2470
  %v2472 = vextract.high.u32 %v2470
  %v2473 = vmul.u32.u64.compose %v2469, %v2464
  %v2474 = vextract.low.u32 %v2473
  %v2475 = vextract.high.u32 %v2473
  %v2476 = vmul.u32 %v2469, %v2460
  %v2477 = vadd.s32 %v2472, %v2474
  %vm2478 = vc.u32 %v2472, %v2474
  %v2479 = vadd.s32 %v2475, 1
  %v2480 = vsel %vm2478, %v2479, %v2475
  %v2481 = vadd.s32 %v2476, %v2480
  %v2482 = vadd.s32 %v2481, 536870912
  %v2483 = vshrl.u32 %v2482, 30
  %v2484 = vshll.u32 %v2483, 30
  %v2485 = vsub.s32 %v2481, %v2484
  %vm2486 = vcmp.lt.s32.totalorder %v2485, 0
  %v2487 = vsub.s32 0, %v2485
  %v2488 = vsel %vm2486, %v2487, %v2485
  %v2489 = vclz %v2488
  %v2490 = vsub.s32 %v2489, 2
  %vm2491 = vcmp.gt.s32.totalorder 0, %v2490
  %v2492 = vsel %vm2491, 0, %v2490
  %v2493 = vsub.s32 32, %v2492
  %v2494 = vshll.u32 %v2485, %v2492
  %v2495 = vshrl.u32 %v2477, %v2493
  %v2496 = vor.u32 %v2494, %v2495
  %v2497 = vsub.s32 4294967266, %v2492
  %v2498 = vadd.s32 %v2497, 127
  %v2499 = vshll.u32 %v2498, 23
  %v2500 = vor.u32 4788187, %v2499
  %v2501 = vand.u32 2147483647, %v2500
  %v2503 = vcvt.s32.f32 %v2496
  %v2504 = vmul.f32 %v2503, %v2501
  %v2505 = vxor.u32 %v2504, 2147483648
  %v2506 = vsel %vm2423, %v2505, %v2504
  %v2507 = vsub.s32 4, %v2483
  %v2508 = vsel %vm2423, %v2507, %v2483
  %v2509 = vsel %vm2422, %v336, %v2506
  %v2510 = vsel %vm2422, 0, %v2508
  %v2511 = vcosq.f32.pop %v2509
  %v2512 = vsinq.f32.pop %v2509
  %vm2513 = vweird.f32 %v336
  %v2514 = vadd.s32 %v2510, 3
  %v2515 = vand.u32 %v2514, 3
  %vm2516 = vcmp.lt.s32.totalorder %v2515, 2
  %vm2517 = vcmp.eq.s32.totalorder %v2515, 0
  %v2518 = vxor.u32 %v2512, 2147483648
  %v2519 = vsel %vm2517, %v2511, %v2518
  %vm2520 = vcmp.eq.s32.totalorder %v2515, 2
  %v2521 = vxor.u32 %v2511, 2147483648
  %v2522 = vsel %vm2520, %v2521, %v2512
  %v2523 = vsel %vm2516, %v2519, %v2522
  %v2524 = vsel %vm2513, nan, %v2523
  %v2525 = vand.u32 2147483647, %v337
  %vm2526 = vcmp.le.f32.partialorder %v2525, 0.7853982
  %vm2527 = vcmp.lt.s32.totalorder %v337, 0
  %v2528 = vand.u32 %v337, 2139095040
  %v2529 = vshrl.u32 %v2528, 23
  %v2530 = vsub.s32 %v2529, 127
  %v2531 = vand.u32 2147483647, %v337
  %v2532 = vand.u32 %v2531, 8388607
  %v2533 = vor.u32 %v2532, 8388608
  %v2534 = vsub.s32 0, %v2533
  %v2535 = vadd.s32 %v2530, 1
  %vm2536 = vcmp.gt.s32.totalorder %v2535, 0
  %v2537 = vsel %vm2536, %v2535, 0
  %v2538 = vshrl.u32 %v2537, 5
  %v2539 = vand.u32 %v2537, 31
  %v2540 = vsub.s32 32, %v2539
  %v2541 = vshrl.u32 683565275, %v2540
  %v2542 = vshll.u32 683565275, %v2539
  %v2543 = vshrl.u32 2475754826, %v2540
  %v2544 = vor.u32 %v2542, %v2543
  %v2545 = vshll.u32 2475754826, %v2539
  %v2546 = vshrl.u32 2131351028, %v2540
  %v2547 = vor.u32 %v2545, %v2546
  %v2548 = vshll.u32 2131351028, %v2539
  %v2549 = vshrl.u32 2102212464, %v2540
  %v2550 = vor.u32 %v2548, %v2549
  %v2551 = vshll.u32 2102212464, %v2539
  %v2552 = vshrl.u32 920167782, %v2540
  %v2553 = vor.u32 %v2551, %v2552
  %v2554 = vshll.u32 920167782, %v2539
  %v2555 = vshrl.u32 1326507024, %v2540
  %v2556 = vor.u32 %v2554, %v2555
  %vm2557 = vcmp.lt.s32.totalorder %v2538, 1
  %vm2558 = vcmp.lt.s32.totalorder %v2538, 2
  %vm2559 = vcmp.lt.s32.totalorder %v2538, 3
  %vm2560 = vcmp.lt.s32.totalorder %v2538, 4
  %v2561 = vsel %vm2557, %v2541, %v2544
  %v2562 = vsel %vm2560, %v2550, 2102212464
  %v2563 = vsel %vm2559, %v2547, %v2562
  %v2564 = vsel %vm2558, %v2561, %v2563
  %v2565 = vsel %vm2557, %v2544, %v2547
  %v2566 = vsel %vm2560, %v2553, 920167782
  %v2567 = vsel %vm2559, %v2550, %v2566
  %v2568 = vsel %vm2558, %v2565, %v2567
  %v2569 = vsel %vm2557, %v2547, %v2550
  %v2570 = vsel %vm2560, %v2556, 1326507024
  %v2571 = vsel %vm2559, %v2553, %v2570
  %v2572 = vsel %vm2558, %v2569, %v2571
  %v2573 = vshll.u32 %v2533, 8
  %v2574 = vmul.u32.u64.compose %v2573, %v2572
  %v2575 = vextract.low.u32 %v2574
  %v2576 = vextract.high.u32 %v2574
  %v2577 = vmul.u32.u64.compose %v2573, %v2568
  %v2578 = vextract.low.u32 %v2577
  %v2579 = vextract.high.u32 %v2577
  %v2580 = vmul.u32 %v2573, %v2564
  %v2581 = vadd.s32 %v2576, %v2578
  %vm2582 = vc.u32 %v2576, %v2578
  %v2583 = vadd.s32 %v2579, 1
  %v2584 = vsel %vm2582, %v2583, %v2579
  %v2585 = vadd.s32 %v2580, %v2584
  %v2586 = vadd.s32 %v2585, 536870912
  %v2587 = vshrl.u32 %v2586, 30
  %v2588 = vshll.u32 %v2587, 30
  %v2589 = vsub.s32 %v2585, %v2588
  %vm2590 = vcmp.lt.s32.totalorder %v2589, 0
  %v2591 = vsub.s32 0, %v2589
  %v2592 = vsel %vm2590, %v2591, %v2589
  %v2593 = vclz %v2592
  %v2594 = vsub.s32 %v2593, 2
  %vm2595 = vcmp.gt.s32.totalorder 0, %v2594
  %v2596 = vsel %vm2595, 0, %v2594
  %v2597 = vsub.s32 32, %v2596
  %v2598 = vshll.u32 %v2589, %v2596
  %v2599 = vshrl.u32 %v2581, %v2597
  %v2600 = vor.u32 %v2598, %v2599
  %v2601 = vsub.s32 4294967266, %v2596
  %v2602 = vadd.s32 %v2601, 127
  %v2603 = vshll.u32 %v2602, 23
  %v2604 = vor.u32 4788187, %v2603
  %v2605 = vand.u32 2147483647, %v2604
  %v2607 = vcvt.s32.f32 %v2600
  %v2608 = vmul.f32 %v2607, %v2605
  %v2609 = vxor.u32 %v2608, 2147483648
  %v2610 = vsel %vm2527, %v2609, %v2608
  %v2611 = vsub.s32 4, %v2587
  %v2612 = vsel %vm2527, %v2611, %v2587
  %v2613 = vsel %vm2526, %v337, %v2610
  %v2614 = vsel %vm2526, 0, %v2612
  %v2615 = vcosq.f32.pop %v2613
  %v2616 = vsinq.f32.pop %v2613
  %vm2617 = vweird.f32 %v337
  %v2618 = vadd.s32 %v2614, 3
  %v2619 = vand.u32 %v2618, 3
  %vm2620 = vcmp.lt.s32.totalorder %v2619, 2
  %vm2621 = vcmp.eq.s32.totalorder %v2619, 0
  %v2622 = vxor.u32 %v2616, 2147483648
  %v2623 = vsel %vm2621, %v2615, %v2622
  %vm2624 = vcmp.eq.s32.totalorder %v2619, 2
  %v2625 = vxor.u32 %v2615, 2147483648
  %v2626 = vsel %vm2624, %v2625, %v2616
  %v2627 = vsel %vm2620, %v2623, %v2626
  %v2628 = vsel %vm2617, nan, %v2627
  %v2629 = vand.u32 2147483647, %v338
  %vm2630 = vcmp.le.f32.partialorder %v2629, 0.7853982
  %vm2631 = vcmp.lt.s32.totalorder %v338, 0
  %v2632 = vand.u32 %v338, 2139095040
  %v2633 = vshrl.u32 %v2632, 23
  %v2634 = vsub.s32 %v2633, 127
  %v2635 = vand.u32 2147483647, %v338
  %v2636 = vand.u32 %v2635, 8388607
  %v2637 = vor.u32 %v2636, 8388608
  %v2638 = vsub.s32 0, %v2637
  %v2639 = vadd.s32 %v2634, 1
  %vm2640 = vcmp.gt.s32.totalorder %v2639, 0
  %v2641 = vsel %vm2640, %v2639, 0
  %v2642 = vshrl.u32 %v2641, 5
  %v2643 = vand.u32 %v2641, 31
  %v2644 = vsub.s32 32, %v2643
  %v2645 = vshrl.u32 683565275, %v2644
  %v2646 = vshll.u32 683565275, %v2643
  %v2647 = vshrl.u32 2475754826, %v2644
  %v2648 = vor.u32 %v2646, %v2647
  %v2649 = vshll.u32 2475754826, %v2643
  %v2650 = vshrl.u32 2131351028, %v2644
  %v2651 = vor.u32 %v2649, %v2650
  %v2652 = vshll.u32 2131351028, %v2643
  %v2653 = vshrl.u32 2102212464, %v2644
  %v2654 = vor.u32 %v2652, %v2653
  %v2655 = vshll.u32 2102212464, %v2643
  %v2656 = vshrl.u32 920167782, %v2644
  %v2657 = vor.u32 %v2655, %v2656
  %v2658 = vshll.u32 920167782, %v2643
  %v2659 = vshrl.u32 1326507024, %v2644
  %v2660 = vor.u32 %v2658, %v2659
  %vm2661 = vcmp.lt.s32.totalorder %v2642, 1
  %vm2662 = vcmp.lt.s32.totalorder %v2642, 2
  %vm2663 = vcmp.lt.s32.totalorder %v2642, 3
  %vm2664 = vcmp.lt.s32.totalorder %v2642, 4
  %v2665 = vsel %vm2661, %v2645, %v2648
  %v2666 = vsel %vm2664, %v2654, 2102212464
  %v2667 = vsel %vm2663, %v2651, %v2666
  %v2668 = vsel %vm2662, %v2665, %v2667
  %v2669 = vsel %vm2661, %v2648, %v2651
  %v2670 = vsel %vm2664, %v2657, 920167782
  %v2671 = vsel %vm2663, %v2654, %v2670
  %v2672 = vsel %vm2662, %v2669, %v2671
  %v2673 = vsel %vm2661, %v2651, %v2654
  %v2674 = vsel %vm2664, %v2660, 1326507024
  %v2675 = vsel %vm2663, %v2657, %v2674
  %v2676 = vsel %vm2662, %v2673, %v2675
  %v2677 = vshll.u32 %v2637, 8
  %v2678 = vmul.u32.u64.compose %v2677, %v2676
  %v2679 = vextract.low.u32 %v2678
  %v2680 = vextract.high.u32 %v2678
  %v2681 = vmul.u32.u64.compose %v2677, %v2672
  %v2682 = vextract.low.u32 %v2681
  %v2683 = vextract.high.u32 %v2681
  %v2684 = vmul.u32 %v2677, %v2668
  %v2685 = vadd.s32 %v2680, %v2682
  %vm2686 = vc.u32 %v2680, %v2682
  %v2687 = vadd.s32 %v2683, 1
  %v2688 = vsel %vm2686, %v2687, %v2683
  %v2689 = vadd.s32 %v2684, %v2688
  %v2690 = vadd.s32 %v2689, 536870912
  %v2691 = vshrl.u32 %v2690, 30
  %v2692 = vshll.u32 %v2691, 30
  %v2693 = vsub.s32 %v2689, %v2692
  %vm2694 = vcmp.lt.s32.totalorder %v2693, 0
  %v2695 = vsub.s32 0, %v2693
  %v2696 = vsel %vm2694, %v2695, %v2693
  %v2697 = vclz %v2696
  %v2698 = vsub.s32 %v2697, 2
  %vm2699 = vcmp.gt.s32.totalorder 0, %v2698
  %v2700 = vsel %vm2699, 0, %v2698
  %v2701 = vsub.s32 32, %v2700
  %v2702 = vshll.u32 %v2693, %v2700
  %v2703 = vshrl.u32 %v2685, %v2701
  %v2704 = vor.u32 %v2702, %v2703
  %v2705 = vsub.s32 4294967266, %v2700
  %v2706 = vadd.s32 %v2705, 127
  %v2707 = vshll.u32 %v2706, 23
  %v2708 = vor.u32 4788187, %v2707
  %v2709 = vand.u32 2147483647, %v2708
  %v2711 = vcvt.s32.f32 %v2704
  %v2712 = vmul.f32 %v2711, %v2709
  %v2713 = vxor.u32 %v2712, 2147483648
  %v2714 = vsel %vm2631, %v2713, %v2712
  %v2715 = vsub.s32 4, %v2691
  %v2716 = vsel %vm2631, %v2715, %v2691
  %v2717 = vsel %vm2630, %v338, %v2714
  %v2718 = vsel %vm2630, 0, %v2716
  %v2719 = vcosq.f32.pop %v2717
  %v2720 = vsinq.f32.pop %v2717
  %vm2721 = vweird.f32 %v338
  %v2722 = vadd.s32 %v2718, 3
  %v2723 = vand.u32 %v2722, 3
  %vm2724 = vcmp.lt.s32.totalorder %v2723, 2
  %vm2725 = vcmp.eq.s32.totalorder %v2723, 0
  %v2726 = vxor.u32 %v2720, 2147483648
  %v2727 = vsel %vm2725, %v2719, %v2726
  %vm2728 = vcmp.eq.s32.totalorder %v2723, 2
  %v2729 = vxor.u32 %v2719, 2147483648
  %v2730 = vsel %vm2728, %v2729, %v2720
  %v2731 = vsel %vm2724, %v2727, %v2730
  %v2732 = vsel %vm2721, nan, %v2731
  %v2733 = vand.u32 2147483647, %v339
  %vm2734 = vcmp.le.f32.partialorder %v2733, 0.7853982
  %vm2735 = vcmp.lt.s32.totalorder %v339, 0
  %v2736 = vand.u32 %v339, 2139095040
  %v2737 = vshrl.u32 %v2736, 23
  %v2738 = vsub.s32 %v2737, 127
  %v2739 = vand.u32 2147483647, %v339
  %v2740 = vand.u32 %v2739, 8388607
  %v2741 = vor.u32 %v2740, 8388608
  %v2742 = vsub.s32 0, %v2741
  %v2743 = vadd.s32 %v2738, 1
  %vm2744 = vcmp.gt.s32.totalorder %v2743, 0
  %v2745 = vsel %vm2744, %v2743, 0
  %v2746 = vshrl.u32 %v2745, 5
  %v2747 = vand.u32 %v2745, 31
  %v2748 = vsub.s32 32, %v2747
  %v2749 = vshrl.u32 683565275, %v2748
  %v2750 = vshll.u32 683565275, %v2747
  %v2751 = vshrl.u32 2475754826, %v2748
  %v2752 = vor.u32 %v2750, %v2751
  %v2753 = vshll.u32 2475754826, %v2747
  %v2754 = vshrl.u32 2131351028, %v2748
  %v2755 = vor.u32 %v2753, %v2754
  %v2756 = vshll.u32 2131351028, %v2747
  %v2757 = vshrl.u32 2102212464, %v2748
  %v2758 = vor.u32 %v2756, %v2757
  %v2759 = vshll.u32 2102212464, %v2747
  %v2760 = vshrl.u32 920167782, %v2748
  %v2761 = vor.u32 %v2759, %v2760
  %v2762 = vshll.u32 920167782, %v2747
  %v2763 = vshrl.u32 1326507024, %v2748
  %v2764 = vor.u32 %v2762, %v2763
  %vm2765 = vcmp.lt.s32.totalorder %v2746, 1
  %vm2766 = vcmp.lt.s32.totalorder %v2746, 2
  %vm2767 = vcmp.lt.s32.totalorder %v2746, 3
  %vm2768 = vcmp.lt.s32.totalorder %v2746, 4
  %v2769 = vsel %vm2765, %v2749, %v2752
  %v2770 = vsel %vm2768, %v2758, 2102212464
  %v2771 = vsel %vm2767, %v2755, %v2770
  %v2772 = vsel %vm2766, %v2769, %v2771
  %v2773 = vsel %vm2765, %v2752, %v2755
  %v2774 = vsel %vm2768, %v2761, 920167782
  %v2775 = vsel %vm2767, %v2758, %v2774
  %v2776 = vsel %vm2766, %v2773, %v2775
  %v2777 = vsel %vm2765, %v2755, %v2758
  %v2778 = vsel %vm2768, %v2764, 1326507024
  %v2779 = vsel %vm2767, %v2761, %v2778
  %v2780 = vsel %vm2766, %v2777, %v2779
  %v2781 = vshll.u32 %v2741, 8
  %v2782 = vmul.u32.u64.compose %v2781, %v2780
  %v2783 = vextract.low.u32 %v2782
  %v2784 = vextract.high.u32 %v2782
  %v2785 = vmul.u32.u64.compose %v2781, %v2776
  %v2786 = vextract.low.u32 %v2785
  %v2787 = vextract.high.u32 %v2785
  %v2788 = vmul.u32 %v2781, %v2772
  %v2789 = vadd.s32 %v2784, %v2786
  %vm2790 = vc.u32 %v2784, %v2786
  %v2791 = vadd.s32 %v2787, 1
  %v2792 = vsel %vm2790, %v2791, %v2787
  %v2793 = vadd.s32 %v2788, %v2792
  %v2794 = vadd.s32 %v2793, 536870912
  %v2795 = vshrl.u32 %v2794, 30
  %v2796 = vshll.u32 %v2795, 30
  %v2797 = vsub.s32 %v2793, %v2796
  %vm2798 = vcmp.lt.s32.totalorder %v2797, 0
  %v2799 = vsub.s32 0, %v2797
  %v2800 = vsel %vm2798, %v2799, %v2797
  %v2801 = vclz %v2800
  %v2802 = vsub.s32 %v2801, 2
  %vm2803 = vcmp.gt.s32.totalorder 0, %v2802
  %v2804 = vsel %vm2803, 0, %v2802
  %v2805 = vsub.s32 32, %v2804
  %v2806 = vshll.u32 %v2797, %v2804
  %v2807 = vshrl.u32 %v2789, %v2805
  %v2808 = vor.u32 %v2806, %v2807
  %v2809 = vsub.s32 4294967266, %v2804
  %v2810 = vadd.s32 %v2809, 127
  %v2811 = vshll.u32 %v2810, 23
  %v2812 = vor.u32 4788187, %v2811
  %v2813 = vand.u32 2147483647, %v2812
  %v2815 = vcvt.s32.f32 %v2808
  %v2816 = vmul.f32 %v2815, %v2813
  %v2817 = vxor.u32 %v2816, 2147483648
  %v2818 = vsel %vm2735, %v2817, %v2816
  %v2819 = vsub.s32 4, %v2795
  %v2820 = vsel %vm2735, %v2819, %v2795
  %v2821 = vsel %vm2734, %v339, %v2818
  %v2822 = vsel %vm2734, 0, %v2820
  %v2823 = vcosq.f32.pop %v2821
  %v2824 = vsinq.f32.pop %v2821
  %vm2825 = vweird.f32 %v339
  %v2826 = vadd.s32 %v2822, 3
  %v2827 = vand.u32 %v2826, 3
  %vm2828 = vcmp.lt.s32.totalorder %v2827, 2
  %vm2829 = vcmp.eq.s32.totalorder %v2827, 0
  %v2830 = vxor.u32 %v2824, 2147483648
  %v2831 = vsel %vm2829, %v2823, %v2830
  %vm2832 = vcmp.eq.s32.totalorder %v2827, 2
  %v2833 = vxor.u32 %v2823, 2147483648
  %v2834 = vsel %vm2832, %v2833, %v2824
  %v2835 = vsel %vm2828, %v2831, %v2834
  %v2836 = vsel %vm2825, nan, %v2835
  %v2837 = vand.u32 2147483647, %v340
  %vm2838 = vcmp.le.f32.partialorder %v2837, 0.7853982
  %vm2839 = vcmp.lt.s32.totalorder %v340, 0
  %v2840 = vand.u32 %v340, 2139095040
  %v2841 = vshrl.u32 %v2840, 23
  %v2842 = vsub.s32 %v2841, 127
  %v2843 = vand.u32 2147483647, %v340
  %v2844 = vand.u32 %v2843, 8388607
  %v2845 = vor.u32 %v2844, 8388608
  %v2846 = vsub.s32 0, %v2845
  %v2847 = vadd.s32 %v2842, 1
  %vm2848 = vcmp.gt.s32.totalorder %v2847, 0
  %v2849 = vsel %vm2848, %v2847, 0
  %v2850 = vshrl.u32 %v2849, 5
  %v2851 = vand.u32 %v2849, 31
  %v2852 = vsub.s32 32, %v2851
  %v2853 = vshrl.u32 683565275, %v2852
  %v2854 = vshll.u32 683565275, %v2851
  %v2855 = vshrl.u32 2475754826, %v2852
  %v2856 = vor.u32 %v2854, %v2855
  %v2857 = vshll.u32 2475754826, %v2851
  %v2858 = vshrl.u32 2131351028, %v2852
  %v2859 = vor.u32 %v2857, %v2858
  %v2860 = vshll.u32 2131351028, %v2851
  %v2861 = vshrl.u32 2102212464, %v2852
  %v2862 = vor.u32 %v2860, %v2861
  %v2863 = vshll.u32 2102212464, %v2851
  %v2864 = vshrl.u32 920167782, %v2852
  %v2865 = vor.u32 %v2863, %v2864
  %v2866 = vshll.u32 920167782, %v2851
  %v2867 = vshrl.u32 1326507024, %v2852
  %v2868 = vor.u32 %v2866, %v2867
  %vm2869 = vcmp.lt.s32.totalorder %v2850, 1
  %vm2870 = vcmp.lt.s32.totalorder %v2850, 2
  %vm2871 = vcmp.lt.s32.totalorder %v2850, 3
  %vm2872 = vcmp.lt.s32.totalorder %v2850, 4
  %v2873 = vsel %vm2869, %v2853, %v2856
  %v2874 = vsel %vm2872, %v2862, 2102212464
  %v2875 = vsel %vm2871, %v2859, %v2874
  %v2876 = vsel %vm2870, %v2873, %v2875
  %v2877 = vsel %vm2869, %v2856, %v2859
  %v2878 = vsel %vm2872, %v2865, 920167782
  %v2879 = vsel %vm2871, %v2862, %v2878
  %v2880 = vsel %vm2870, %v2877, %v2879
  %v2881 = vsel %vm2869, %v2859, %v2862
  %v2882 = vsel %vm2872, %v2868, 1326507024
  %v2883 = vsel %vm2871, %v2865, %v2882
  %v2884 = vsel %vm2870, %v2881, %v2883
  %v2885 = vshll.u32 %v2845, 8
  %v2886 = vmul.u32.u64.compose %v2885, %v2884
  %v2887 = vextract.low.u32 %v2886
  %v2888 = vextract.high.u32 %v2886
  %v2889 = vmul.u32.u64.compose %v2885, %v2880
  %v2890 = vextract.low.u32 %v2889
  %v2891 = vextract.high.u32 %v2889
  %v2892 = vmul.u32 %v2885, %v2876
  %v2893 = vadd.s32 %v2888, %v2890
  %vm2894 = vc.u32 %v2888, %v2890
  %v2895 = vadd.s32 %v2891, 1
  %v2896 = vsel %vm2894, %v2895, %v2891
  %v2897 = vadd.s32 %v2892, %v2896
  %v2898 = vadd.s32 %v2897, 536870912
  %v2899 = vshrl.u32 %v2898, 30
  %v2900 = vshll.u32 %v2899, 30
  %v2901 = vsub.s32 %v2897, %v2900
  %vm2902 = vcmp.lt.s32.totalorder %v2901, 0
  %v2903 = vsub.s32 0, %v2901
  %v2904 = vsel %vm2902, %v2903, %v2901
  %v2905 = vclz %v2904
  %v2906 = vsub.s32 %v2905, 2
  %vm2907 = vcmp.gt.s32.totalorder 0, %v2906
  %v2908 = vsel %vm2907, 0, %v2906
  %v2909 = vsub.s32 32, %v2908
  %v2910 = vshll.u32 %v2901, %v2908
  %v2911 = vshrl.u32 %v2893, %v2909
  %v2912 = vor.u32 %v2910, %v2911
  %v2913 = vsub.s32 4294967266, %v2908
  %v2914 = vadd.s32 %v2913, 127
  %v2915 = vshll.u32 %v2914, 23
  %v2916 = vor.u32 4788187, %v2915
  %v2917 = vand.u32 2147483647, %v2916
  %v2919 = vcvt.s32.f32 %v2912
  %v2920 = vmul.f32 %v2919, %v2917
  %v2921 = vxor.u32 %v2920, 2147483648
  %v2922 = vsel %vm2839, %v2921, %v2920
  %v2923 = vsub.s32 4, %v2899
  %v2924 = vsel %vm2839, %v2923, %v2899
  %v2925 = vsel %vm2838, %v340, %v2922
  %v2926 = vsel %vm2838, 0, %v2924
  %v2927 = vcosq.f32.pop %v2925
  %v2928 = vsinq.f32.pop %v2925
  %vm2929 = vweird.f32 %v340
  %v2930 = vadd.s32 %v2926, 3
  %v2931 = vand.u32 %v2930, 3
  %vm2932 = vcmp.lt.s32.totalorder %v2931, 2
  %vm2933 = vcmp.eq.s32.totalorder %v2931, 0
  %v2934 = vxor.u32 %v2928, 2147483648
  %v2935 = vsel %vm2933, %v2927, %v2934
  %vm2936 = vcmp.eq.s32.totalorder %v2931, 2
  %v2937 = vxor.u32 %v2927, 2147483648
  %v2938 = vsel %vm2936, %v2937, %v2928
  %v2939 = vsel %vm2932, %v2935, %v2938
  %v2940 = vsel %vm2929, nan, %v2939
  %vm2941 = vcmask 523264
  %2942 = vst.msk [vmem:[%s3] sm:$0xff] %vm2941, %v444
  %2943 = vst.msk [vmem:[%s3 + $0x8] sm:$0xff] %vm2941, %v548
  %2944 = vst.msk [vmem:[%s3 + $0x10] sm:$0xff] %vm2941, %v652
  %2945 = vst.msk [vmem:[%s3 + $0x18] sm:$0xff] %vm2941, %v756
  %2946 = vst.msk [vmem:[%s3 + $0x20] sm:$0xff] %vm2941, %v860
  %2947 = vst.msk [vmem:[%s3 + $0x28] sm:$0xff] %vm2941, %v964
  %2948 = vst.msk [vmem:[%s3 + $0x30] sm:$0xff] %vm2941, %v1068
  %2949 = vst.msk [vmem:[%s3 + $0x38] sm:$0xff] %vm2941, %v1172
  %2950 = vst.msk [vmem:[%s3 + $0x40] sm:$0xff] %vm2941, %v1276
  %2951 = vst.msk [vmem:[%s3 + $0x48] sm:$0xff] %vm2941, %v1380
  %2952 = vst.msk [vmem:[%s3 + $0x50] sm:$0xff] %vm2941, %v1484
  %2953 = vst.msk [vmem:[%s3 + $0x58] sm:$0xff] %vm2941, %v1588
  %2954 = vst.msk [vmem:[%s3 + $0x60] sm:$0xff] %vm2941, %v1692
  %2955 = vst.msk [vmem:[%s3 + $0x68] sm:$0xff] %vm2941, %v1796
  %2956 = vst.msk [vmem:[%s3 + $0x70] sm:$0xff] %vm2941, %v1900
  %2957 = vst.msk [vmem:[%s3 + $0x78] sm:$0xff] %vm2941, %v2004
  %2958 = vst.msk [vmem:[%s3 + $0x80] sm:$0xff] %vm2941, %v2108
  %2959 = vst.msk [vmem:[%s3 + $0x88] sm:$0xff] %vm2941, %v2212
  %2960 = vst.msk [vmem:[%s3 + $0x90] sm:$0xff] %vm2941, %v2316
  %2961 = vst.msk [vmem:[%s3 + $0x98] sm:$0xff] %vm2941, %v2420
  %2962 = vst.msk [vmem:[%s3 + $0xa0] sm:$0xff] %vm2941, %v2524
  %2963 = vst.msk [vmem:[%s3 + $0xa8] sm:$0xff] %vm2941, %v2628
  %2964 = vst.msk [vmem:[%s3 + $0xb0] sm:$0xff] %vm2941, %v2732
  %2965 = vst.msk [vmem:[%s3 + $0xb8] sm:$0xff] %vm2941, %v2836
  %2966 = vst.msk [vmem:[%s3 + $0xc0] sm:$0xff] %vm2941, %v2940
  // Predicated region
  $region14: #{tpu_custom_call.1} parent=0 // pred_check
    _
  $region15: #{tpu_custom_call.1} parent=0 // pred_check_branch
    %2968 = sbr.rel (0) target = $region17
  $region16: #{tpu_custom_call.1} parent=0 // pred_region
    _
  $region17: #{tpu_custom_call.1} parent=0 // pred_fallthru
    _
  // Predicated region
  $region18: #{tpu_custom_call.1} parent=0 // pred_check
    _
  $region19: #{tpu_custom_call.1} parent=0 // pred_check_branch
    %2970 = sbr.rel (0) target = $region21
  $region20: #{tpu_custom_call.1} parent=0 // pred_region
    _
  $region21: #{tpu_custom_call.1} parent=0 // pred_fallthru
    _

</llo_original>
